<compile_context>
chip_gen: v7x
topology: tpu7x:2x2x1
jax: 0.10.0
libtpu: 0.0.40
codegen_flags: <defaults>
</compile_context>

<pallas_src>
import jax
import jax.numpy as jnp
from jax.experimental import pallas as pl
from jax.experimental.pallas import tpu as pltpu

# Small shapes consistent with the module: batch=2, seq=8, input_dim=16,
# hidden_dim=32, output_dim=4, n_layers=2.
B, T, D, H, O, L = 2, 8, 16, 32, 4, 2


def _lstm_cell(gates, c):
    """PyTorch gate order (i|f|g|o); gates is the pre-activation (B, 4H)."""
    sig = jax.nn.sigmoid(gates)             # one EUP issue for the full vreg
    i = sig[:, 0:H]
    f = sig[:, H:2 * H]
    o = sig[:, 3 * H:4 * H]
    g = jnp.tanh(gates[:, 2 * H:3 * H])     # single tanh for the g band
    c_new = f * c + i * g
    h_new = o * jnp.tanh(c_new)
    return h_new, c_new


def lstm_net_kernel(x_ref, hinit_ref, cinit_ref,
                    w_ih0_ref, b0_ref,
                    w_top_ref, w_hh1_ref, b1_ref,
                    fc_w_ref, fc_b_ref,
                    out_ref, hT_ref, cT_ref):
    # ---- hoisted layer-0 input projection: one batched MXU call, bias folded.
    xg0 = (jnp.dot(x_ref[...], w_ih0_ref[...],
                   preferred_element_type=jnp.float32) + b0_ref[...])

    w_top = w_top_ref[...]                  # (H, 8H) = [W_hh0ᵀ | W_ih1ᵀ]
    w_hh1 = w_hh1_ref[...]                  # (H, 4H)
    b1 = b1_ref[...]                        # already (B, 4H): plain VPU add

    h0 = hinit_ref[0]
    c0 = cinit_ref[0]
    h1 = hinit_ref[1]
    c1 = cinit_ref[1]

    # ---- fully unrolled recurrence, software-pipelined across the two layers:
    # at iteration t, layer 0 runs timestep t and layer 1 runs timestep t-1.
    # The single matmul against w_top produces BOTH the layer-0 recurrent term
    # (cols 0:4H) for step t and the layer-1 input term (cols 4H:8H) for step
    # t-1, since both read the same h0 (layer-0 hidden after step t-1).
    for t in range(T + 1):
        z = jnp.dot(h0, w_top, preferred_element_type=jnp.float32)   # (B, 8H)
        if t > 0:
            # Layer-1 step t-1: recurrent matmul depends only on values from
            # the previous iteration, so it interleaves with layer-0's work.
            g1 = (z[:, 4 * H:]
                  + jnp.dot(h1, w_hh1, preferred_element_type=jnp.float32)
                  + b1)
        if t < T:
            g0 = z[:, :4 * H] + xg0[t * B:(t + 1) * B, :]
            h0, c0 = _lstm_cell(g0, c0)
        if t > 0:
            h1, c1 = _lstm_cell(g1, c1)

    # ---- fc(relu(out[:, -1])): last timestep of the top layer ----
    out_ref[...] = (jnp.dot(jnp.maximum(h1, 0.0), fc_w_ref[...],
                            preferred_element_type=jnp.float32) + fc_b_ref[...])
    hT_ref[0] = h0
    hT_ref[1] = h1
    cT_ref[0] = c0
    cT_ref[1] = c1


def lstm_net_forward(x, h0, c0, params):
    """x: (B, T, D) batch_first; h0/c0: (L, B, H). Returns (out, (hT, cT))."""
    (w_ih0, w_hh0, b_ih0, b_hh0,
     w_ih1, w_hh1, b_ih1, b_hh1,
     fc_w, fc_b) = params

    # Layout plumbing only: time-major flatten so row t*B + b  ==  x[b, t].
    x_flat = jnp.transpose(x, (1, 0, 2)).reshape(T * B, D)

    # Fuse layer-0 recurrent weight with layer-1 input weight along the output
    # dim: z = h0 @ w_top gives [layer-0 gates | layer-1 input-gates].
    w_top = jnp.concatenate([w_hh0.T, w_ih1.T], axis=1)               # (H, 8H)

    args = (x_flat, h0, c0,
            w_ih0.T, (b_ih0 + b_hh0)[None, :],                        # (1, 4H)
            w_top, w_hh1.T,
            jnp.broadcast_to((b_ih1 + b_hh1)[None, :], (B, 4 * H)),   # (B, 4H)
            fc_w.T, fc_b[None, :])

    vmem = pl.BlockSpec(memory_space=pltpu.MemorySpace.VMEM)

    out, hT, cT = pl.pallas_call(
        lstm_net_kernel,
        out_shape=(jax.ShapeDtypeStruct((B, O), jnp.float32),
                   jax.ShapeDtypeStruct((L, B, H), jnp.float32),
                   jax.ShapeDtypeStruct((L, B, H), jnp.float32)),
        in_specs=[vmem] * len(args),
        out_specs=(vmem, vmem, vmem),
    )(*args)
    return out, (hT, cT)


def _reference_forward(x, h0, c0, params):
    """Pure-JAX reference matching PyTorch nn.LSTM (eval) + ReLU + Linear."""
    (w_ih0, w_hh0, b_ih0, b_hh0,
     w_ih1, w_hh1, b_ih1, b_hh1,
     fc_w, fc_b) = params
    layers = [(w_ih0, w_hh0, b_ih0, b_hh0), (w_ih1, w_hh1, b_ih1, b_hh1)]

    seq = x
    hTs, cTs = [], []
    for layer_idx, (w_ih, w_hh, b_ih, b_hh) in enumerate(layers):
        h = h0[layer_idx]
        c = c0[layer_idx]
        outs = []
        for t in range(seq.shape[1]):
            g = seq[:, t] @ w_ih.T + b_ih + h @ w_hh.T + b_hh
            i, f, gg, o = jnp.split(g, 4, axis=-1)
            i, f, o = jax.nn.sigmoid(i), jax.nn.sigmoid(f), jax.nn.sigmoid(o)
            gg = jnp.tanh(gg)
            c = f * c + i * gg
            h = o * jnp.tanh(c)
            outs.append(h)
        seq = jnp.stack(outs, axis=1)
        hTs.append(h)
        cTs.append(c)

    out = jnp.maximum(seq[:, -1], 0.0) @ fc_w.T + fc_b
    return out, (jnp.stack(hTs, 0), jnp.stack(cTs, 0))


if __name__ == "__main__":
    key = jax.random.PRNGKey(0)
    ks = jax.random.split(key, 11)
    k_scale = 1.0 / jnp.sqrt(jnp.float32(H))

    def u(k, shape):
        return jax.random.uniform(k, shape, jnp.float32, -k_scale, k_scale)

    # PyTorch nn.LSTM / nn.Linear parameter shapes, deterministic init.
    w_ih0 = u(ks[0], (4 * H, D))
    w_hh0 = u(ks[1], (4 * H, H))
    b_ih0 = u(ks[2], (4 * H,))
    b_hh0 = u(ks[3], (4 * H,))
    w_ih1 = u(ks[4], (4 * H, H))
    w_hh1 = u(ks[5], (4 * H, H))
    b_ih1 = u(ks[6], (4 * H,))
    b_hh1 = u(ks[7], (4 * H,))
    fc_w = u(ks[8], (O, H))
    fc_b = u(ks[9], (O,))
    params = (w_ih0, w_hh0, b_ih0, b_hh0,
              w_ih1, w_hh1, b_ih1, b_hh1,
              fc_w, fc_b)

    x = jax.random.normal(ks[10], (B, T, D), jnp.float32)
    h0 = jnp.zeros((L, B, H), jnp.float32)  # init_hidden()
    c0 = jnp.zeros((L, B, H), jnp.float32)

    out, (hT, cT) = lstm_net_forward(x, h0, c0, params)
    jax.block_until_ready((out, hT, cT))

    ref_out, (ref_hT, ref_cT) = _reference_forward(x, h0, c0, params)
    assert jnp.allclose(out, ref_out, atol=1e-5, rtol=1e-5)
    assert jnp.allclose(hT, ref_hT, atol=1e-5, rtol=1e-5)
    assert jnp.allclose(cT, ref_cT, atol=1e-5, rtol=1e-5)

    print("KERNEL_OK")
</pallas_src>

<mosaic_0001>
module attributes {stable_mosaic.version = 11 : i64} {
  func.func @lstm_net_kernel(%arg0: memref<16x16xf32, #tpu.memory_space<vmem>>, %arg1: memref<2x2x32xf32, #tpu.memory_space<vmem>>, %arg2: memref<2x2x32xf32, #tpu.memory_space<vmem>>, %arg3: memref<16x128xf32, #tpu.memory_space<vmem>>, %arg4: memref<1x128xf32, #tpu.memory_space<vmem>>, %arg5: memref<32x256xf32, #tpu.memory_space<vmem>>, %arg6: memref<32x128xf32, #tpu.memory_space<vmem>>, %arg7: memref<2x128xf32, #tpu.memory_space<vmem>>, %arg8: memref<32x4xf32, #tpu.memory_space<vmem>>, %arg9: memref<1x4xf32, #tpu.memory_space<vmem>>, %arg10: memref<2x4xf32, #tpu.memory_space<vmem>>, %arg11: memref<2x2x32xf32, #tpu.memory_space<vmem>>, %arg12: memref<2x2x32xf32, #tpu.memory_space<vmem>>) attributes {dimension_semantics = [], scalar_prefetch = 0 : i64, scratch_operands = 0 : i64, tpu.core_type = #tpu.core_type<tc>} {
    %c0 = arith.constant 0 : index
    %c0_0 = arith.constant 0 : index
    %0 = vector.load %arg0[%c0, %c0_0] : memref<16x16xf32, #tpu.memory_space<vmem>>, vector<16x16xf32>
    %c0_1 = arith.constant 0 : index
    %c0_2 = arith.constant 0 : index
    %1 = vector.load %arg3[%c0_1, %c0_2] : memref<16x128xf32, #tpu.memory_space<vmem>>, vector<16x128xf32>
    %cst = arith.constant dense<0.000000e+00> : vector<16x128xf32>
    %2 = tpu.matmul %0, %1, %cst {dimension_numbers = #tpu.dot_dimension_numbers<[1], [0], [0], [1], [0, 0, 1, 1], [], []>} : vector<16x16xf32>, vector<16x128xf32>, vector<16x128xf32> -> vector<16x128xf32>
    %c0_3 = arith.constant 0 : index
    %c0_4 = arith.constant 0 : index
    %3 = vector.load %arg4[%c0_3, %c0_4] : memref<1x128xf32, #tpu.memory_space<vmem>>, vector<1x128xf32>
    %4 = vector.broadcast %3 : vector<1x128xf32> to vector<16x128xf32>
    %5 = arith.addf %2, %4 : vector<16x128xf32>
    %c0_5 = arith.constant 0 : index
    %c0_6 = arith.constant 0 : index
    %6 = vector.load %arg5[%c0_5, %c0_6] : memref<32x256xf32, #tpu.memory_space<vmem>>, vector<32x256xf32>
    %c0_7 = arith.constant 0 : index
    %c0_8 = arith.constant 0 : index
    %7 = vector.load %arg6[%c0_7, %c0_8] : memref<32x128xf32, #tpu.memory_space<vmem>>, vector<32x128xf32>
    %c0_9 = arith.constant 0 : index
    %c0_10 = arith.constant 0 : index
    %8 = vector.load %arg7[%c0_9, %c0_10] : memref<2x128xf32, #tpu.memory_space<vmem>>, vector<2x128xf32>
    %c0_11 = arith.constant 0 : index
    %c0_12 = arith.constant 0 : index
    %c0_13 = arith.constant 0 : index
    %9 = vector.load %arg1[%c0_11, %c0_12, %c0_13] : memref<2x2x32xf32, #tpu.memory_space<vmem>>, vector<1x2x32xf32>
    %10 = vector.shape_cast %9 : vector<1x2x32xf32> to vector<2x32xf32>
    %c0_14 = arith.constant 0 : index
    %c0_15 = arith.constant 0 : index
    %c0_16 = arith.constant 0 : index
    %11 = vector.load %arg2[%c0_14, %c0_15, %c0_16] : memref<2x2x32xf32, #tpu.memory_space<vmem>>, vector<1x2x32xf32>
    %12 = vector.shape_cast %11 : vector<1x2x32xf32> to vector<2x32xf32>
    %c1 = arith.constant 1 : index
    %c0_17 = arith.constant 0 : index
    %c0_18 = arith.constant 0 : index
    %13 = vector.load %arg1[%c1, %c0_17, %c0_18] : memref<2x2x32xf32, #tpu.memory_space<vmem>>, vector<1x2x32xf32>
    %14 = vector.shape_cast %13 : vector<1x2x32xf32> to vector<2x32xf32>
    %c1_19 = arith.constant 1 : index
    %c0_20 = arith.constant 0 : index
    %c0_21 = arith.constant 0 : index
    %15 = vector.load %arg2[%c1_19, %c0_20, %c0_21] : memref<2x2x32xf32, #tpu.memory_space<vmem>>, vector<1x2x32xf32>
    %16 = vector.shape_cast %15 : vector<1x2x32xf32> to vector<2x32xf32>
    %cst_22 = arith.constant dense<0.000000e+00> : vector<2x256xf32>
    %17 = tpu.matmul %10, %6, %cst_22 {dimension_numbers = #tpu.dot_dimension_numbers<[1], [0], [0], [1], [0, 0, 1, 1], [], []>} : vector<2x32xf32>, vector<32x256xf32>, vector<2x256xf32> -> vector<2x256xf32>
    %18 = vector.extract_strided_slice %17 {offsets = [0, 0], sizes = [2, 128], strides = [1, 1]} : vector<2x256xf32> to vector<2x128xf32>
    %19 = vector.extract_strided_slice %5 {offsets = [0, 0], sizes = [2, 128], strides = [1, 1]} : vector<16x128xf32> to vector<2x128xf32>
    %20 = arith.addf %18, %19 : vector<2x128xf32>
    %21 = arith.negf %20 : vector<2x128xf32>
    %22 = math.exp %21 : vector<2x128xf32>
    %cst_23 = arith.constant 1.000000e+00 : f32
    %23 = vector.broadcast %cst_23 : f32 to vector<2x128xf32>
    %24 = arith.addf %23, %22 : vector<2x128xf32>
    %25 = arith.divf %23, %24 : vector<2x128xf32>
    %26 = vector.extract_strided_slice %25 {offsets = [0, 0], sizes = [2, 32], strides = [1, 1]} : vector<2x128xf32> to vector<2x32xf32>
    %27 = vector.extract_strided_slice %25 {offsets = [0, 32], sizes = [2, 32], strides = [1, 1]} : vector<2x128xf32> to vector<2x32xf32>
    %28 = vector.extract_strided_slice %25 {offsets = [0, 96], sizes = [2, 32], strides = [1, 1]} : vector<2x128xf32> to vector<2x32xf32>
    %29 = vector.extract_strided_slice %20 {offsets = [0, 64], sizes = [2, 32], strides = [1, 1]} : vector<2x128xf32> to vector<2x32xf32>
    %30 = math.tanh %29 : vector<2x32xf32>
    %31 = arith.mulf %27, %12 : vector<2x32xf32>
    %32 = arith.mulf %26, %30 : vector<2x32xf32>
    %33 = arith.addf %31, %32 : vector<2x32xf32>
    %34 = math.tanh %33 : vector<2x32xf32>
    %35 = arith.mulf %28, %34 : vector<2x32xf32>
    %cst_24 = arith.constant dense<0.000000e+00> : vector<2x256xf32>
    %36 = tpu.matmul %35, %6, %cst_24 {dimension_numbers = #tpu.dot_dimension_numbers<[1], [0], [0], [1], [0, 0, 1, 1], [], []>} : vector<2x32xf32>, vector<32x256xf32>, vector<2x256xf32> -> vector<2x256xf32>
    %37 = vector.extract_strided_slice %36 {offsets = [0, 128], sizes = [2, 128], strides = [1, 1]} : vector<2x256xf32> to vector<2x128xf32>
    %cst_25 = arith.constant dense<0.000000e+00> : vector<2x128xf32>
    %38 = tpu.matmul %14, %7, %cst_25 {dimension_numbers = #tpu.dot_dimension_numbers<[1], [0], [0], [1], [0, 0, 1, 1], [], []>} : vector<2x32xf32>, vector<32x128xf32>, vector<2x128xf32> -> vector<2x128xf32>
    %39 = arith.addf %37, %38 : vector<2x128xf32>
    %40 = arith.addf %39, %8 : vector<2x128xf32>
    %41 = vector.extract_strided_slice %36 {offsets = [0, 0], sizes = [2, 128], strides = [1, 1]} : vector<2x256xf32> to vector<2x128xf32>
    %42 = vector.extract_strided_slice %5 {offsets = [2, 0], sizes = [2, 128], strides = [1, 1]} : vector<16x128xf32> to vector<2x128xf32>
    %43 = arith.addf %41, %42 : vector<2x128xf32>
    %44 = arith.negf %43 : vector<2x128xf32>
    %45 = math.exp %44 : vector<2x128xf32>
    %cst_26 = arith.constant 1.000000e+00 : f32
    %46 = vector.broadcast %cst_26 : f32 to vector<2x128xf32>
    %47 = arith.addf %46, %45 : vector<2x128xf32>
    %48 = arith.divf %46, %47 : vector<2x128xf32>
    %49 = vector.extract_strided_slice %48 {offsets = [0, 0], sizes = [2, 32], strides = [1, 1]} : vector<2x128xf32> to vector<2x32xf32>
    %50 = vector.extract_strided_slice %48 {offsets = [0, 32], sizes = [2, 32], strides = [1, 1]} : vector<2x128xf32> to vector<2x32xf32>
    %51 = vector.extract_strided_slice %48 {offsets = [0, 96], sizes = [2, 32], strides = [1, 1]} : vector<2x128xf32> to vector<2x32xf32>
    %52 = vector.extract_strided_slice %43 {offsets = [0, 64], sizes = [2, 32], strides = [1, 1]} : vector<2x128xf32> to vector<2x32xf32>
    %53 = math.tanh %52 : vector<2x32xf32>
    %54 = arith.mulf %50, %33 : vector<2x32xf32>
    %55 = arith.mulf %49, %53 : vector<2x32xf32>
    %56 = arith.addf %54, %55 : vector<2x32xf32>
    %57 = math.tanh %56 : vector<2x32xf32>
    %58 = arith.mulf %51, %57 : vector<2x32xf32>
    %59 = arith.negf %40 : vector<2x128xf32>
    %60 = math.exp %59 : vector<2x128xf32>
    %cst_27 = arith.constant 1.000000e+00 : f32
    %61 = vector.broadcast %cst_27 : f32 to vector<2x128xf32>
    %62 = arith.addf %61, %60 : vector<2x128xf32>
    %63 = arith.divf %61, %62 : vector<2x128xf32>
    %64 = vector.extract_strided_slice %63 {offsets = [0, 0], sizes = [2, 32], strides = [1, 1]} : vector<2x128xf32> to vector<2x32xf32>
    %65 = vector.extract_strided_slice %63 {offsets = [0, 32], sizes = [2, 32], strides = [1, 1]} : vector<2x128xf32> to vector<2x32xf32>
    %66 = vector.extract_strided_slice %63 {offsets = [0, 96], sizes = [2, 32], strides = [1, 1]} : vector<2x128xf32> to vector<2x32xf32>
    %67 = vector.extract_strided_slice %40 {offsets = [0, 64], sizes = [2, 32], strides = [1, 1]} : vector<2x128xf32> to vector<2x32xf32>
    %68 = math.tanh %67 : vector<2x32xf32>
    %69 = arith.mulf %65, %16 : vector<2x32xf32>
    %70 = arith.mulf %64, %68 : vector<2x32xf32>
    %71 = arith.addf %69, %70 : vector<2x32xf32>
    %72 = math.tanh %71 : vector<2x32xf32>
    %73 = arith.mulf %66, %72 : vector<2x32xf32>
    %cst_28 = arith.constant dense<0.000000e+00> : vector<2x256xf32>
    %74 = tpu.matmul %58, %6, %cst_28 {dimension_numbers = #tpu.dot_dimension_numbers<[1], [0], [0], [1], [0, 0, 1, 1], [], []>} : vector<2x32xf32>, vector<32x256xf32>, vector<2x256xf32> -> vector<2x256xf32>
    %75 = vector.extract_strided_slice %74 {offsets = [0, 128], sizes = [2, 128], strides = [1, 1]} : vector<2x256xf32> to vector<2x128xf32>
    %cst_29 = arith.constant dense<0.000000e+00> : vector<2x128xf32>
    %76 = tpu.matmul %73, %7, %cst_29 {dimension_numbers = #tpu.dot_dimension_numbers<[1], [0], [0], [1], [0, 0, 1, 1], [], []>} : vector<2x32xf32>, vector<32x128xf32>, vector<2x128xf32> -> vector<2x128xf32>
    %77 = arith.addf %75, %76 : vector<2x128xf32>
    %78 = arith.addf %77, %8 : vector<2x128xf32>
    %79 = vector.extract_strided_slice %74 {offsets = [0, 0], sizes = [2, 128], strides = [1, 1]} : vector<2x256xf32> to vector<2x128xf32>
    %80 = vector.extract_strided_slice %5 {offsets = [4, 0], sizes = [2, 128], strides = [1, 1]} : vector<16x128xf32> to vector<2x128xf32>
    %81 = arith.addf %79, %80 : vector<2x128xf32>
    %82 = arith.negf %81 : vector<2x128xf32>
    %83 = math.exp %82 : vector<2x128xf32>
    %cst_30 = arith.constant 1.000000e+00 : f32
    %84 = vector.broadcast %cst_30 : f32 to vector<2x128xf32>
    %85 = arith.addf %84, %83 : vector<2x128xf32>
    %86 = arith.divf %84, %85 : vector<2x128xf32>
    %87 = vector.extract_strided_slice %86 {offsets = [0, 0], sizes = [2, 32], strides = [1, 1]} : vector<2x128xf32> to vector<2x32xf32>
    %88 = vector.extract_strided_slice %86 {offsets = [0, 32], sizes = [2, 32], strides = [1, 1]} : vector<2x128xf32> to vector<2x32xf32>
    %89 = vector.extract_strided_slice %86 {offsets = [0, 96], sizes = [2, 32], strides = [1, 1]} : vector<2x128xf32> to vector<2x32xf32>
    %90 = vector.extract_strided_slice %81 {offsets = [0, 64], sizes = [2, 32], strides = [1, 1]} : vector<2x128xf32> to vector<2x32xf32>
    %91 = math.tanh %90 : vector<2x32xf32>
    %92 = arith.mulf %88, %56 : vector<2x32xf32>
    %93 = arith.mulf %87, %91 : vector<2x32xf32>
    %94 = arith.addf %92, %93 : vector<2x32xf32>
    %95 = math.tanh %94 : vector<2x32xf32>
    %96 = arith.mulf %89, %95 : vector<2x32xf32>
    %97 = arith.negf %78 : vector<2x128xf32>
    %98 = math.exp %97 : vector<2x128xf32>
    %cst_31 = arith.constant 1.000000e+00 : f32
    %99 = vector.broadcast %cst_31 : f32 to vector<2x128xf32>
    %100 = arith.addf %99, %98 : vector<2x128xf32>
    %101 = arith.divf %99, %100 : vector<2x128xf32>
    %102 = vector.extract_strided_slice %101 {offsets = [0, 0], sizes = [2, 32], strides = [1, 1]} : vector<2x128xf32> to vector<2x32xf32>
    %103 = vector.extract_strided_slice %101 {offsets = [0, 32], sizes = [2, 32], strides = [1, 1]} : vector<2x128xf32> to vector<2x32xf32>
    %104 = vector.extract_strided_slice %101 {offsets = [0, 96], sizes = [2, 32], strides = [1, 1]} : vector<2x128xf32> to vector<2x32xf32>
    %105 = vector.extract_strided_slice %78 {offsets = [0, 64], sizes = [2, 32], strides = [1, 1]} : vector<2x128xf32> to vector<2x32xf32>
    %106 = math.tanh %105 : vector<2x32xf32>
    %107 = arith.mulf %103, %71 : vector<2x32xf32>
    %108 = arith.mulf %102, %106 : vector<2x32xf32>
    %109 = arith.addf %107, %108 : vector<2x32xf32>
    %110 = math.tanh %109 : vector<2x32xf32>
    %111 = arith.mulf %104, %110 : vector<2x32xf32>
    %cst_32 = arith.constant dense<0.000000e+00> : vector<2x256xf32>
    %112 = tpu.matmul %96, %6, %cst_32 {dimension_numbers = #tpu.dot_dimension_numbers<[1], [0], [0], [1], [0, 0, 1, 1], [], []>} : vector<2x32xf32>, vector<32x256xf32>, vector<2x256xf32> -> vector<2x256xf32>
    %113 = vector.extract_strided_slice %112 {offsets = [0, 128], sizes = [2, 128], strides = [1, 1]} : vector<2x256xf32> to vector<2x128xf32>
    %cst_33 = arith.constant dense<0.000000e+00> : vector<2x128xf32>
    %114 = tpu.matmul %111, %7, %cst_33 {dimension_numbers = #tpu.dot_dimension_numbers<[1], [0], [0], [1], [0, 0, 1, 1], [], []>} : vector<2x32xf32>, vector<32x128xf32>, vector<2x128xf32> -> vector<2x128xf32>
    %115 = arith.addf %113, %114 : vector<2x128xf32>
    %116 = arith.addf %115, %8 : vector<2x128xf32>
    %117 = vector.extract_strided_slice %112 {offsets = [0, 0], sizes = [2, 128], strides = [1, 1]} : vector<2x256xf32> to vector<2x128xf32>
    %118 = vector.extract_strided_slice %5 {offsets = [6, 0], sizes = [2, 128], strides = [1, 1]} : vector<16x128xf32> to vector<2x128xf32>
    %119 = arith.addf %117, %118 : vector<2x128xf32>
    %120 = arith.negf %119 : vector<2x128xf32>
    %121 = math.exp %120 : vector<2x128xf32>
    %cst_34 = arith.constant 1.000000e+00 : f32
    %122 = vector.broadcast %cst_34 : f32 to vector<2x128xf32>
    %123 = arith.addf %122, %121 : vector<2x128xf32>
    %124 = arith.divf %122, %123 : vector<2x128xf32>
    %125 = vector.extract_strided_slice %124 {offsets = [0, 0], sizes = [2, 32], strides = [1, 1]} : vector<2x128xf32> to vector<2x32xf32>
    %126 = vector.extract_strided_slice %124 {offsets = [0, 32], sizes = [2, 32], strides = [1, 1]} : vector<2x128xf32> to vector<2x32xf32>
    %127 = vector.extract_strided_slice %124 {offsets = [0, 96], sizes = [2, 32], strides = [1, 1]} : vector<2x128xf32> to vector<2x32xf32>
    %128 = vector.extract_strided_slice %119 {offsets = [0, 64], sizes = [2, 32], strides = [1, 1]} : vector<2x128xf32> to vector<2x32xf32>
    %129 = math.tanh %128 : vector<2x32xf32>
    %130 = arith.mulf %126, %94 : vector<2x32xf32>
    %131 = arith.mulf %125, %129 : vector<2x32xf32>
    %132 = arith.addf %130, %131 : vector<2x32xf32>
    %133 = math.tanh %132 : vector<2x32xf32>
    %134 = arith.mulf %127, %133 : vector<2x32xf32>
    %135 = arith.negf %116 : vector<2x128xf32>
    %136 = math.exp %135 : vector<2x128xf32>
    %cst_35 = arith.constant 1.000000e+00 : f32
    %137 = vector.broadcast %cst_35 : f32 to vector<2x128xf32>
    %138 = arith.addf %137, %136 : vector<2x128xf32>
    %139 = arith.divf %137, %138 : vector<2x128xf32>
    %140 = vector.extract_strided_slice %139 {offsets = [0, 0], sizes = [2, 32], strides = [1, 1]} : vector<2x128xf32> to vector<2x32xf32>
    %141 = vector.extract_strided_slice %139 {offsets = [0, 32], sizes = [2, 32], strides = [1, 1]} : vector<2x128xf32> to vector<2x32xf32>
    %142 = vector.extract_strided_slice %139 {offsets = [0, 96], sizes = [2, 32], strides = [1, 1]} : vector<2x128xf32> to vector<2x32xf32>
    %143 = vector.extract_strided_slice %116 {offsets = [0, 64], sizes = [2, 32], strides = [1, 1]} : vector<2x128xf32> to vector<2x32xf32>
    %144 = math.tanh %143 : vector<2x32xf32>
    %145 = arith.mulf %141, %109 : vector<2x32xf32>
    %146 = arith.mulf %140, %144 : vector<2x32xf32>
    %147 = arith.addf %145, %146 : vector<2x32xf32>
    %148 = math.tanh %147 : vector<2x32xf32>
    %149 = arith.mulf %142, %148 : vector<2x32xf32>
    %cst_36 = arith.constant dense<0.000000e+00> : vector<2x256xf32>
    %150 = tpu.matmul %134, %6, %cst_36 {dimension_numbers = #tpu.dot_dimension_numbers<[1], [0], [0], [1], [0, 0, 1, 1], [], []>} : vector<2x32xf32>, vector<32x256xf32>, vector<2x256xf32> -> vector<2x256xf32>
    %151 = vector.extract_strided_slice %150 {offsets = [0, 128], sizes = [2, 128], strides = [1, 1]} : vector<2x256xf32> to vector<2x128xf32>
    %cst_37 = arith.constant dense<0.000000e+00> : vector<2x128xf32>
    %152 = tpu.matmul %149, %7, %cst_37 {dimension_numbers = #tpu.dot_dimension_numbers<[1], [0], [0], [1], [0, 0, 1, 1], [], []>} : vector<2x32xf32>, vector<32x128xf32>, vector<2x128xf32> -> vector<2x128xf32>
    %153 = arith.addf %151, %152 : vector<2x128xf32>
    %154 = arith.addf %153, %8 : vector<2x128xf32>
    %155 = vector.extract_strided_slice %150 {offsets = [0, 0], sizes = [2, 128], strides = [1, 1]} : vector<2x256xf32> to vector<2x128xf32>
    %156 = vector.extract_strided_slice %5 {offsets = [8, 0], sizes = [2, 128], strides = [1, 1]} : vector<16x128xf32> to vector<2x128xf32>
    %157 = arith.addf %155, %156 : vector<2x128xf32>
    %158 = arith.negf %157 : vector<2x128xf32>
    %159 = math.exp %158 : vector<2x128xf32>
    %cst_38 = arith.constant 1.000000e+00 : f32
    %160 = vector.broadcast %cst_38 : f32 to vector<2x128xf32>
    %161 = arith.addf %160, %159 : vector<2x128xf32>
    %162 = arith.divf %160, %161 : vector<2x128xf32>
    %163 = vector.extract_strided_slice %162 {offsets = [0, 0], sizes = [2, 32], strides = [1, 1]} : vector<2x128xf32> to vector<2x32xf32>
    %164 = vector.extract_strided_slice %162 {offsets = [0, 32], sizes = [2, 32], strides = [1, 1]} : vector<2x128xf32> to vector<2x32xf32>
    %165 = vector.extract_strided_slice %162 {offsets = [0, 96], sizes = [2, 32], strides = [1, 1]} : vector<2x128xf32> to vector<2x32xf32>
    %166 = vector.extract_strided_slice %157 {offsets = [0, 64], sizes = [2, 32], strides = [1, 1]} : vector<2x128xf32> to vector<2x32xf32>
    %167 = math.tanh %166 : vector<2x32xf32>
    %168 = arith.mulf %164, %132 : vector<2x32xf32>
    %169 = arith.mulf %163, %167 : vector<2x32xf32>
    %170 = arith.addf %168, %169 : vector<2x32xf32>
    %171 = math.tanh %170 : vector<2x32xf32>
    %172 = arith.mulf %165, %171 : vector<2x32xf32>
    %173 = arith.negf %154 : vector<2x128xf32>
    %174 = math.exp %173 : vector<2x128xf32>
    %cst_39 = arith.constant 1.000000e+00 : f32
    %175 = vector.broadcast %cst_39 : f32 to vector<2x128xf32>
    %176 = arith.addf %175, %174 : vector<2x128xf32>
    %177 = arith.divf %175, %176 : vector<2x128xf32>
    %178 = vector.extract_strided_slice %177 {offsets = [0, 0], sizes = [2, 32], strides = [1, 1]} : vector<2x128xf32> to vector<2x32xf32>
    %179 = vector.extract_strided_slice %177 {offsets = [0, 32], sizes = [2, 32], strides = [1, 1]} : vector<2x128xf32> to vector<2x32xf32>
    %180 = vector.extract_strided_slice %177 {offsets = [0, 96], sizes = [2, 32], strides = [1, 1]} : vector<2x128xf32> to vector<2x32xf32>
    %181 = vector.extract_strided_slice %154 {offsets = [0, 64], sizes = [2, 32], strides = [1, 1]} : vector<2x128xf32> to vector<2x32xf32>
    %182 = math.tanh %181 : vector<2x32xf32>
    %183 = arith.mulf %179, %147 : vector<2x32xf32>
    %184 = arith.mulf %178, %182 : vector<2x32xf32>
    %185 = arith.addf %183, %184 : vector<2x32xf32>
    %186 = math.tanh %185 : vector<2x32xf32>
    %187 = arith.mulf %180, %186 : vector<2x32xf32>
    %cst_40 = arith.constant dense<0.000000e+00> : vector<2x256xf32>
    %188 = tpu.matmul %172, %6, %cst_40 {dimension_numbers = #tpu.dot_dimension_numbers<[1], [0], [0], [1], [0, 0, 1, 1], [], []>} : vector<2x32xf32>, vector<32x256xf32>, vector<2x256xf32> -> vector<2x256xf32>
    %189 = vector.extract_strided_slice %188 {offsets = [0, 128], sizes = [2, 128], strides = [1, 1]} : vector<2x256xf32> to vector<2x128xf32>
    %cst_41 = arith.constant dense<0.000000e+00> : vector<2x128xf32>
    %190 = tpu.matmul %187, %7, %cst_41 {dimension_numbers = #tpu.dot_dimension_numbers<[1], [0], [0], [1], [0, 0, 1, 1], [], []>} : vector<2x32xf32>, vector<32x128xf32>, vector<2x128xf32> -> vector<2x128xf32>
    %191 = arith.addf %189, %190 : vector<2x128xf32>
    %192 = arith.addf %191, %8 : vector<2x128xf32>
    %193 = vector.extract_strided_slice %188 {offsets = [0, 0], sizes = [2, 128], strides = [1, 1]} : vector<2x256xf32> to vector<2x128xf32>
    %194 = vector.extract_strided_slice %5 {offsets = [10, 0], sizes = [2, 128], strides = [1, 1]} : vector<16x128xf32> to vector<2x128xf32>
    %195 = arith.addf %193, %194 : vector<2x128xf32>
    %196 = arith.negf %195 : vector<2x128xf32>
    %197 = math.exp %196 : vector<2x128xf32>
    %cst_42 = arith.constant 1.000000e+00 : f32
    %198 = vector.broadcast %cst_42 : f32 to vector<2x128xf32>
    %199 = arith.addf %198, %197 : vector<2x128xf32>
    %200 = arith.divf %198, %199 : vector<2x128xf32>
    %201 = vector.extract_strided_slice %200 {offsets = [0, 0], sizes = [2, 32], strides = [1, 1]} : vector<2x128xf32> to vector<2x32xf32>
    %202 = vector.extract_strided_slice %200 {offsets = [0, 32], sizes = [2, 32], strides = [1, 1]} : vector<2x128xf32> to vector<2x32xf32>
    %203 = vector.extract_strided_slice %200 {offsets = [0, 96], sizes = [2, 32], strides = [1, 1]} : vector<2x128xf32> to vector<2x32xf32>
    %204 = vector.extract_strided_slice %195 {offsets = [0, 64], sizes = [2, 32], strides = [1, 1]} : vector<2x128xf32> to vector<2x32xf32>
    %205 = math.tanh %204 : vector<2x32xf32>
    %206 = arith.mulf %202, %170 : vector<2x32xf32>
    %207 = arith.mulf %201, %205 : vector<2x32xf32>
    %208 = arith.addf %206, %207 : vector<2x32xf32>
    %209 = math.tanh %208 : vector<2x32xf32>
    %210 = arith.mulf %203, %209 : vector<2x32xf32>
    %211 = arith.negf %192 : vector<2x128xf32>
    %212 = math.exp %211 : vector<2x128xf32>
    %cst_43 = arith.constant 1.000000e+00 : f32
    %213 = vector.broadcast %cst_43 : f32 to vector<2x128xf32>
    %214 = arith.addf %213, %212 : vector<2x128xf32>
    %215 = arith.divf %213, %214 : vector<2x128xf32>
    %216 = vector.extract_strided_slice %215 {offsets = [0, 0], sizes = [2, 32], strides = [1, 1]} : vector<2x128xf32> to vector<2x32xf32>
    %217 = vector.extract_strided_slice %215 {offsets = [0, 32], sizes = [2, 32], strides = [1, 1]} : vector<2x128xf32> to vector<2x32xf32>
    %218 = vector.extract_strided_slice %215 {offsets = [0, 96], sizes = [2, 32], strides = [1, 1]} : vector<2x128xf32> to vector<2x32xf32>
    %219 = vector.extract_strided_slice %192 {offsets = [0, 64], sizes = [2, 32], strides = [1, 1]} : vector<2x128xf32> to vector<2x32xf32>
    %220 = math.tanh %219 : vector<2x32xf32>
    %221 = arith.mulf %217, %185 : vector<2x32xf32>
    %222 = arith.mulf %216, %220 : vector<2x32xf32>
    %223 = arith.addf %221, %222 : vector<2x32xf32>
    %224 = math.tanh %223 : vector<2x32xf32>
    %225 = arith.mulf %218, %224 : vector<2x32xf32>
    %cst_44 = arith.constant dense<0.000000e+00> : vector<2x256xf32>
    %226 = tpu.matmul %210, %6, %cst_44 {dimension_numbers = #tpu.dot_dimension_numbers<[1], [0], [0], [1], [0, 0, 1, 1], [], []>} : vector<2x32xf32>, vector<32x256xf32>, vector<2x256xf32> -> vector<2x256xf32>
    %227 = vector.extract_strided_slice %226 {offsets = [0, 128], sizes = [2, 128], strides = [1, 1]} : vector<2x256xf32> to vector<2x128xf32>
    %cst_45 = arith.constant dense<0.000000e+00> : vector<2x128xf32>
    %228 = tpu.matmul %225, %7, %cst_45 {dimension_numbers = #tpu.dot_dimension_numbers<[1], [0], [0], [1], [0, 0, 1, 1], [], []>} : vector<2x32xf32>, vector<32x128xf32>, vector<2x128xf32> -> vector<2x128xf32>
    %229 = arith.addf %227, %228 : vector<2x128xf32>
    %230 = arith.addf %229, %8 : vector<2x128xf32>
    %231 = vector.extract_strided_slice %226 {offsets = [0, 0], sizes = [2, 128], strides = [1, 1]} : vector<2x256xf32> to vector<2x128xf32>
    %232 = vector.extract_strided_slice %5 {offsets = [12, 0], sizes = [2, 128], strides = [1, 1]} : vector<16x128xf32> to vector<2x128xf32>
    %233 = arith.addf %231, %232 : vector<2x128xf32>
    %234 = arith.negf %233 : vector<2x128xf32>
    %235 = math.exp %234 : vector<2x128xf32>
    %cst_46 = arith.constant 1.000000e+00 : f32
    %236 = vector.broadcast %cst_46 : f32 to vector<2x128xf32>
    %237 = arith.addf %236, %235 : vector<2x128xf32>
    %238 = arith.divf %236, %237 : vector<2x128xf32>
    %239 = vector.extract_strided_slice %238 {offsets = [0, 0], sizes = [2, 32], strides = [1, 1]} : vector<2x128xf32> to vector<2x32xf32>
    %240 = vector.extract_strided_slice %238 {offsets = [0, 32], sizes = [2, 32], strides = [1, 1]} : vector<2x128xf32> to vector<2x32xf32>
    %241 = vector.extract_strided_slice %238 {offsets = [0, 96], sizes = [2, 32], strides = [1, 1]} : vector<2x128xf32> to vector<2x32xf32>
    %242 = vector.extract_strided_slice %233 {offsets = [0, 64], sizes = [2, 32], strides = [1, 1]} : vector<2x128xf32> to vector<2x32xf32>
    %243 = math.tanh %242 : vector<2x32xf32>
    %244 = arith.mulf %240, %208 : vector<2x32xf32>
    %245 = arith.mulf %239, %243 : vector<2x32xf32>
    %246 = arith.addf %244, %245 : vector<2x32xf32>
    %247 = math.tanh %246 : vector<2x32xf32>
    %248 = arith.mulf %241, %247 : vector<2x32xf32>
    %249 = arith.negf %230 : vector<2x128xf32>
    %250 = math.exp %249 : vector<2x128xf32>
    %cst_47 = arith.constant 1.000000e+00 : f32
    %251 = vector.broadcast %cst_47 : f32 to vector<2x128xf32>
    %252 = arith.addf %251, %250 : vector<2x128xf32>
    %253 = arith.divf %251, %252 : vector<2x128xf32>
    %254 = vector.extract_strided_slice %253 {offsets = [0, 0], sizes = [2, 32], strides = [1, 1]} : vector<2x128xf32> to vector<2x32xf32>
    %255 = vector.extract_strided_slice %253 {offsets = [0, 32], sizes = [2, 32], strides = [1, 1]} : vector<2x128xf32> to vector<2x32xf32>
    %256 = vector.extract_strided_slice %253 {offsets = [0, 96], sizes = [2, 32], strides = [1, 1]} : vector<2x128xf32> to vector<2x32xf32>
    %257 = vector.extract_strided_slice %230 {offsets = [0, 64], sizes = [2, 32], strides = [1, 1]} : vector<2x128xf32> to vector<2x32xf32>
    %258 = math.tanh %257 : vector<2x32xf32>
    %259 = arith.mulf %255, %223 : vector<2x32xf32>
    %260 = arith.mulf %254, %258 : vector<2x32xf32>
    %261 = arith.addf %259, %260 : vector<2x32xf32>
    %262 = math.tanh %261 : vector<2x32xf32>
    %263 = arith.mulf %256, %262 : vector<2x32xf32>
    %cst_48 = arith.constant dense<0.000000e+00> : vector<2x256xf32>
    %264 = tpu.matmul %248, %6, %cst_48 {dimension_numbers = #tpu.dot_dimension_numbers<[1], [0], [0], [1], [0, 0, 1, 1], [], []>} : vector<2x32xf32>, vector<32x256xf32>, vector<2x256xf32> -> vector<2x256xf32>
    %265 = vector.extract_strided_slice %264 {offsets = [0, 128], sizes = [2, 128], strides = [1, 1]} : vector<2x256xf32> to vector<2x128xf32>
    %cst_49 = arith.constant dense<0.000000e+00> : vector<2x128xf32>
    %266 = tpu.matmul %263, %7, %cst_49 {dimension_numbers = #tpu.dot_dimension_numbers<[1], [0], [0], [1], [0, 0, 1, 1], [], []>} : vector<2x32xf32>, vector<32x128xf32>, vector<2x128xf32> -> vector<2x128xf32>
    %267 = arith.addf %265, %266 : vector<2x128xf32>
    %268 = arith.addf %267, %8 : vector<2x128xf32>
    %269 = vector.extract_strided_slice %264 {offsets = [0, 0], sizes = [2, 128], strides = [1, 1]} : vector<2x256xf32> to vector<2x128xf32>
    %270 = vector.extract_strided_slice %5 {offsets = [14, 0], sizes = [2, 128], strides = [1, 1]} : vector<16x128xf32> to vector<2x128xf32>
    %271 = arith.addf %269, %270 : vector<2x128xf32>
    %272 = arith.negf %271 : vector<2x128xf32>
    %273 = math.exp %272 : vector<2x128xf32>
    %cst_50 = arith.constant 1.000000e+00 : f32
    %274 = vector.broadcast %cst_50 : f32 to vector<2x128xf32>
    %275 = arith.addf %274, %273 : vector<2x128xf32>
    %276 = arith.divf %274, %275 : vector<2x128xf32>
    %277 = vector.extract_strided_slice %276 {offsets = [0, 0], sizes = [2, 32], strides = [1, 1]} : vector<2x128xf32> to vector<2x32xf32>
    %278 = vector.extract_strided_slice %276 {offsets = [0, 32], sizes = [2, 32], strides = [1, 1]} : vector<2x128xf32> to vector<2x32xf32>
    %279 = vector.extract_strided_slice %276 {offsets = [0, 96], sizes = [2, 32], strides = [1, 1]} : vector<2x128xf32> to vector<2x32xf32>
    %280 = vector.extract_strided_slice %271 {offsets = [0, 64], sizes = [2, 32], strides = [1, 1]} : vector<2x128xf32> to vector<2x32xf32>
    %281 = math.tanh %280 : vector<2x32xf32>
    %282 = arith.mulf %278, %246 : vector<2x32xf32>
    %283 = arith.mulf %277, %281 : vector<2x32xf32>
    %284 = arith.addf %282, %283 : vector<2x32xf32>
    %285 = math.tanh %284 : vector<2x32xf32>
    %286 = arith.mulf %279, %285 : vector<2x32xf32>
    %287 = arith.negf %268 : vector<2x128xf32>
    %288 = math.exp %287 : vector<2x128xf32>
    %cst_51 = arith.constant 1.000000e+00 : f32
    %289 = vector.broadcast %cst_51 : f32 to vector<2x128xf32>
    %290 = arith.addf %289, %288 : vector<2x128xf32>
    %291 = arith.divf %289, %290 : vector<2x128xf32>
    %292 = vector.extract_strided_slice %291 {offsets = [0, 0], sizes = [2, 32], strides = [1, 1]} : vector<2x128xf32> to vector<2x32xf32>
    %293 = vector.extract_strided_slice %291 {offsets = [0, 32], sizes = [2, 32], strides = [1, 1]} : vector<2x128xf32> to vector<2x32xf32>
    %294 = vector.extract_strided_slice %291 {offsets = [0, 96], sizes = [2, 32], strides = [1, 1]} : vector<2x128xf32> to vector<2x32xf32>
    %295 = vector.extract_strided_slice %268 {offsets = [0, 64], sizes = [2, 32], strides = [1, 1]} : vector<2x128xf32> to vector<2x32xf32>
    %296 = math.tanh %295 : vector<2x32xf32>
    %297 = arith.mulf %293, %261 : vector<2x32xf32>
    %298 = arith.mulf %292, %296 : vector<2x32xf32>
    %299 = arith.addf %297, %298 : vector<2x32xf32>
    %300 = math.tanh %299 : vector<2x32xf32>
    %301 = arith.mulf %294, %300 : vector<2x32xf32>
    %cst_52 = arith.constant dense<0.000000e+00> : vector<2x256xf32>
    %302 = tpu.matmul %286, %6, %cst_52 {dimension_numbers = #tpu.dot_dimension_numbers<[1], [0], [0], [1], [0, 0, 1, 1], [], []>} : vector<2x32xf32>, vector<32x256xf32>, vector<2x256xf32> -> vector<2x256xf32>
    %303 = vector.extract_strided_slice %302 {offsets = [0, 128], sizes = [2, 128], strides = [1, 1]} : vector<2x256xf32> to vector<2x128xf32>
    %cst_53 = arith.constant dense<0.000000e+00> : vector<2x128xf32>
    %304 = tpu.matmul %301, %7, %cst_53 {dimension_numbers = #tpu.dot_dimension_numbers<[1], [0], [0], [1], [0, 0, 1, 1], [], []>} : vector<2x32xf32>, vector<32x128xf32>, vector<2x128xf32> -> vector<2x128xf32>
    %305 = arith.addf %303, %304 : vector<2x128xf32>
    %306 = arith.addf %305, %8 : vector<2x128xf32>
    %307 = arith.negf %306 : vector<2x128xf32>
    %308 = math.exp %307 : vector<2x128xf32>
    %cst_54 = arith.constant 1.000000e+00 : f32
    %309 = vector.broadcast %cst_54 : f32 to vector<2x128xf32>
    %310 = arith.addf %309, %308 : vector<2x128xf32>
    %311 = arith.divf %309, %310 : vector<2x128xf32>
    %312 = vector.extract_strided_slice %311 {offsets = [0, 0], sizes = [2, 32], strides = [1, 1]} : vector<2x128xf32> to vector<2x32xf32>
    %313 = vector.extract_strided_slice %311 {offsets = [0, 32], sizes = [2, 32], strides = [1, 1]} : vector<2x128xf32> to vector<2x32xf32>
    %314 = vector.extract_strided_slice %311 {offsets = [0, 96], sizes = [2, 32], strides = [1, 1]} : vector<2x128xf32> to vector<2x32xf32>
    %315 = vector.extract_strided_slice %306 {offsets = [0, 64], sizes = [2, 32], strides = [1, 1]} : vector<2x128xf32> to vector<2x32xf32>
    %316 = math.tanh %315 : vector<2x32xf32>
    %317 = arith.mulf %313, %299 : vector<2x32xf32>
    %318 = arith.mulf %312, %316 : vector<2x32xf32>
    %319 = arith.addf %317, %318 : vector<2x32xf32>
    %320 = math.tanh %319 : vector<2x32xf32>
    %321 = arith.mulf %314, %320 : vector<2x32xf32>
    %cst_55 = arith.constant 0.000000e+00 : f32
    %322 = vector.broadcast %cst_55 : f32 to vector<2x32xf32>
    %323 = arith.maximumf %321, %322 : vector<2x32xf32>
    %c0_56 = arith.constant 0 : index
    %c0_57 = arith.constant 0 : index
    %324 = vector.load %arg8[%c0_56, %c0_57] : memref<32x4xf32, #tpu.memory_space<vmem>>, vector<32x4xf32>
    %cst_58 = arith.constant dense<0.000000e+00> : vector<2x4xf32>
    %325 = tpu.matmul %323, %324, %cst_58 {dimension_numbers = #tpu.dot_dimension_numbers<[1], [0], [0], [1], [0, 0, 1, 1], [], []>} : vector<2x32xf32>, vector<32x4xf32>, vector<2x4xf32> -> vector<2x4xf32>
    %c0_59 = arith.constant 0 : index
    %c0_60 = arith.constant 0 : index
    %326 = vector.load %arg9[%c0_59, %c0_60] : memref<1x4xf32, #tpu.memory_space<vmem>>, vector<1x4xf32>
    %327 = vector.broadcast %326 : vector<1x4xf32> to vector<2x4xf32>
    %328 = arith.addf %325, %327 : vector<2x4xf32>
    %c0_61 = arith.constant 0 : index
    %c0_62 = arith.constant 0 : index
    %329 = vector.load %arg10[%c0_61, %c0_62] : memref<2x4xf32, #tpu.memory_space<vmem>>, vector<2x4xf32>
    tpu.vector_store %arg10[%c0_61, %c0_62], %328 {strides = array<i32>} : memref<2x4xf32, #tpu.memory_space<vmem>>, vector<2x4xf32>,
    %c0_63 = arith.constant 0 : index
    %c0_64 = arith.constant 0 : index
    %c0_65 = arith.constant 0 : index
    %330 = vector.load %arg11[%c0_63, %c0_64, %c0_65] : memref<2x2x32xf32, #tpu.memory_space<vmem>>, vector<1x2x32xf32>
    %331 = vector.shape_cast %330 : vector<1x2x32xf32> to vector<2x32xf32>
    %332 = vector.shape_cast %286 : vector<2x32xf32> to vector<1x2x32xf32>
    tpu.vector_store %arg11[%c0_63, %c0_64, %c0_65], %332 {strides = array<i32>} : memref<2x2x32xf32, #tpu.memory_space<vmem>>, vector<1x2x32xf32>,
    %c1_66 = arith.constant 1 : index
    %c0_67 = arith.constant 0 : index
    %c0_68 = arith.constant 0 : index
    %333 = vector.load %arg11[%c1_66, %c0_67, %c0_68] : memref<2x2x32xf32, #tpu.memory_space<vmem>>, vector<1x2x32xf32>
    %334 = vector.shape_cast %333 : vector<1x2x32xf32> to vector<2x32xf32>
    %335 = vector.shape_cast %321 : vector<2x32xf32> to vector<1x2x32xf32>
    tpu.vector_store %arg11[%c1_66, %c0_67, %c0_68], %335 {strides = array<i32>} : memref<2x2x32xf32, #tpu.memory_space<vmem>>, vector<1x2x32xf32>,
    %c0_69 = arith.constant 0 : index
    %c0_70 = arith.constant 0 : index
    %c0_71 = arith.constant 0 : index
    %336 = vector.load %arg12[%c0_69, %c0_70, %c0_71] : memref<2x2x32xf32, #tpu.memory_space<vmem>>, vector<1x2x32xf32>
    %337 = vector.shape_cast %336 : vector<1x2x32xf32> to vector<2x32xf32>
    %338 = vector.shape_cast %284 : vector<2x32xf32> to vector<1x2x32xf32>
    tpu.vector_store %arg12[%c0_69, %c0_70, %c0_71], %338 {strides = array<i32>} : memref<2x2x32xf32, #tpu.memory_space<vmem>>, vector<1x2x32xf32>,
    %c1_72 = arith.constant 1 : index
    %c0_73 = arith.constant 0 : index
    %c0_74 = arith.constant 0 : index
    %339 = vector.load %arg12[%c1_72, %c0_73, %c0_74] : memref<2x2x32xf32, #tpu.memory_space<vmem>>, vector<1x2x32xf32>
    %340 = vector.shape_cast %339 : vector<1x2x32xf32> to vector<2x32xf32>
    %341 = vector.shape_cast %319 : vector<2x32xf32> to vector<1x2x32xf32>
    tpu.vector_store %arg12[%c1_72, %c0_73, %c0_74], %341 {strides = array<i32>} : memref<2x2x32xf32, #tpu.memory_space<vmem>>, vector<1x2x32xf32>,
    return
  }
}

</mosaic_0001>

<llo_original>
// kernel: tpu_custom_call.1
$region0: #{tpu_custom_call.1}
  #allocation0 [shape = 'u32[]', space=smem, size = 0x4, offset = 0x4, fixed_abs, tag = 'smem constant byte address 0x4 - core index']
  #allocation1 [shape = 'u32[144,128]{1,0:T(1,128)}', space=vmem, size = 0x12000, scoped, tag = 'internal scratch']
  %s0 = inlined_call_operand.vmem [shape: f32[16,16], index: 0, kind: input, shape index: {}]
  %s1 = inlined_call_operand.vmem [shape: f32[2,2,32], index: 1, kind: input, shape index: {}]
  %s2 = inlined_call_operand.vmem [shape: f32[2,2,32], index: 2, kind: input, shape index: {}]
  %s3 = inlined_call_operand.hbm [shape: f32[16,128], index: 3, kind: input, shape index: {}]
  %s4 = inlined_call_operand.hbm [shape: f32[1,128], index: 4, kind: input, shape index: {}]
  %s5 = inlined_call_operand.hbm [shape: f32[32,256], index: 5, kind: input, shape index: {}]
  %s6 = inlined_call_operand.vmem [shape: f32[32,128], index: 6, kind: input, shape index: {}]
  %s7 = inlined_call_operand.vmem [shape: f32[2,128], index: 7, kind: input, shape index: {}]
  %s8 = inlined_call_operand.vmem [shape: f32[32,4], index: 8, kind: input, shape index: {}]
  %s9 = inlined_call_operand.vmem [shape: f32[1,4], index: 9, kind: input, shape index: {}]
  %s10 = inlined_call_operand.hbm [shape: f32[2,4], index: 10, kind: output, shape index: {0}]
  %s11 = inlined_call_operand.hbm [shape: f32[2,2,32], index: 11, kind: output, shape index: {1}]
  %s12 = inlined_call_operand.hbm [shape: f32[2,2,32], index: 12, kind: output, shape index: {2}]
  %13 = xla_tuple %s10, %s11, %s12
  %s14 = sld [smem:[#allocation0]]
  $region78: #{tpu_custom_call.1} parent=0
    _
  %s16 = ssub.s32 1, %s14
  %s17 = scalar_select 0, %s16, %s14
  $region1: #{tpu_custom_call.1} parent=0
    #allocation2 [shape = 'u8[8192]{0}', space=vmem, size = 0x2000, scoped, tag = 'input window, operand 3, single buffered']
    #allocation3 [shape = 's32[1]{0}', space=sflag, size = 0x4, scoped, tag = 'scoped memory for tpu_custom_call.1']
    #allocation4 [shape = 's32[1]{0}', space=sflag, size = 0x4, scoped, tag = 'scoped memory for tpu_custom_call.1']
    #allocation5 [shape = 'u8[512]{0}', space=vmem, size = 0x400, scoped, tag = 'input window, operand 4, single buffered']
    #allocation6 [shape = 's32[1]{0}', space=sflag, size = 0x4, scoped, tag = 'scoped memory for tpu_custom_call.1']
    #allocation7 [shape = 'u8[32768]{0}', space=vmem, size = 0x8000, scoped, tag = 'input window, operand 5, single buffered']
    #allocation8 [shape = 'u8[1024]{0}', space=vmem, size = 0x400, scoped, tag = 'output window, operand 0, single buffered']
    #allocation9 [shape = 'u8[2048]{0}', space=vmem, size = 0x800, scoped, tag = 'output window, operand 1, single buffered']
    #allocation10 [shape = 's32[1]{0}', space=sflag, size = 0x4, scoped, tag = 'scoped memory for tpu_custom_call.1']
    #allocation11 [shape = 'u8[2048]{0}', space=vmem, size = 0x800, scoped, tag = 'output window, operand 2, single buffered']
    %18 = vsyncpa [#allocation3], 0
    %19 = vsyncpa [#allocation6], 0
    %20 = vsyncpa [#allocation4], 0
    %21 = vsyncpa [#allocation10], 0
    // Predicated region
    $region2: #{tpu_custom_call.1} parent=1 // pred_check
      _
    $region3: #{tpu_custom_call.1} parent=1 // pred_check_branch
      %23 = sbr.rel (0) target = $region5
    $region4: #{tpu_custom_call.1} parent=1 // pred_region
      _
    $region5: #{tpu_custom_call.1} parent=1 // pred_fallthru
      _
    // Predicated region
    $region6: #{tpu_custom_call.1} parent=1 // pred_check
      _
    $region7: #{tpu_custom_call.1} parent=1 // pred_check_branch
      %25 = sbr.rel (0) target = $region9
    $region8: #{tpu_custom_call.1} parent=1 // pred_region
      _
    $region9: #{tpu_custom_call.1} parent=1 // pred_fallthru
      _
    // Predicated region
    $region10: #{tpu_custom_call.1} parent=1 // pred_check
      _
    $region11: #{tpu_custom_call.1} parent=1 // pred_check_branch
      %27 = sbr.rel (0) target = $region13
    $region12: #{tpu_custom_call.1} parent=1 // pred_region
      _
    $region13: #{tpu_custom_call.1} parent=1 // pred_fallthru
      _
    // Predicated region
    $region14: #{tpu_custom_call.1} parent=1 // pred_check
      _
    $region15: #{tpu_custom_call.1} parent=1 // pred_check_branch
      %29 = sbr.rel (0) target = $region17
    $region16: #{tpu_custom_call.1} parent=1 // pred_region
      %s31 = ssub.s32 256, 256
      %32 = vsyncadd [#allocation3], %s31
      %s33 = sshll.u32 [#allocation2], 4
      %s34 = int_to_ptr.vmem [resolvable:$true] %s33
      %39 = dma.hbm_to_vmem [thread:$0]  %s3, 256, %s34, [#allocation3], 128, 128, 8
    $region17: #{tpu_custom_call.1} parent=1 // pred_fallthru
      _
    // Predicated region
    $region18: #{tpu_custom_call.1} parent=1 // pred_check
      _
    $region19: #{tpu_custom_call.1} parent=1 // pred_check_branch
      %41 = sbr.rel (0) target = $region21
    $region20: #{tpu_custom_call.1} parent=1 // pred_region
      %s43 = ssub.s32 16, 16
      %44 = vsyncadd [#allocation6], %s43
      %s46 = sshll.u32 [#allocation5], 4
      %s47 = int_to_ptr.vmem [resolvable:$true] %s46
      %49 = dma.hbm_to_vmem [thread:$0]  %s4, 16, %s47, [#allocation6]
    $region21: #{tpu_custom_call.1} parent=1 // pred_fallthru
      _
    // Predicated region
    $region22: #{tpu_custom_call.1} parent=1 // pred_check
      _
    $region23: #{tpu_custom_call.1} parent=1 // pred_check_branch
      %51 = sbr.rel (0) target = $region25
    $region24: #{tpu_custom_call.1} parent=1 // pred_region
      %s53 = ssub.s32 1024, 1024
      %54 = vsyncadd [#allocation6], %s53
      %s55 = sshll.u32 [#allocation7], 4
      %s56 = int_to_ptr.vmem [resolvable:$true] %s55
      %61 = dma.hbm_to_vmem [thread:$0]  %s5, 1024, %s56, [#allocation6], 256, 256, 16
    $region25: #{tpu_custom_call.1} parent=1 // pred_fallthru
      _
    // Predicated region
    $region26: #{tpu_custom_call.1} parent=1 // pred_check
      _
    $region27: #{tpu_custom_call.1} parent=1 // pred_check_branch
      %63 = sbr.rel (0) target = $region29
    $region28: #{tpu_custom_call.1} parent=1 // pred_region
      _
    $region29: #{tpu_custom_call.1} parent=1 // pred_fallthru
      _
    // Predicated region
    $region30: #{tpu_custom_call.1} parent=1 // pred_check
      _
    $region31: #{tpu_custom_call.1} parent=1 // pred_check_branch
      %65 = sbr.rel (0) target = $region33
    $region32: #{tpu_custom_call.1} parent=1 // pred_region
      _
    $region33: #{tpu_custom_call.1} parent=1 // pred_fallthru
      _
    // Predicated region
    $region34: #{tpu_custom_call.1} parent=1 // pred_check
      _
    $region35: #{tpu_custom_call.1} parent=1 // pred_check_branch
      %67 = sbr.rel (0) target = $region37
    $region36: #{tpu_custom_call.1} parent=1 // pred_region
      _
    $region37: #{tpu_custom_call.1} parent=1 // pred_fallthru
      _
    // Predicated region
    $region38: #{tpu_custom_call.1} parent=1 // pred_check
      _
    $region39: #{tpu_custom_call.1} parent=1 // pred_check_branch
      %69 = sbr.rel (0) target = $region41
    $region40: #{tpu_custom_call.1} parent=1 // pred_region
      _
    $region41: #{tpu_custom_call.1} parent=1 // pred_fallthru
      _
    // Predicated region
    $region42: #{tpu_custom_call.1} parent=1 // pred_check
      _
    $region43: #{tpu_custom_call.1} parent=1 // pred_check_branch
      %71 = sbr.rel (0) target = $region45
    $region44: #{tpu_custom_call.1} parent=1 // pred_region
      %72 = dma.done [#allocation3], 256
    $region45: #{tpu_custom_call.1} parent=1 // pred_fallthru
      _
    // Predicated region
    $region46: #{tpu_custom_call.1} parent=1 // pred_check
      _
    $region47: #{tpu_custom_call.1} parent=1 // pred_check_branch
      %74 = sbr.rel (0) target = $region49
    $region48: #{tpu_custom_call.1} parent=1 // pred_region
      %75 = dma.done [#allocation6], 16
    $region49: #{tpu_custom_call.1} parent=1 // pred_fallthru
      _
    // Predicated region
    $region50: #{tpu_custom_call.1} parent=1 // pred_check
      _
    $region51: #{tpu_custom_call.1} parent=1 // pred_check_branch
      %77 = sbr.rel (0) target = $region53
    $region52: #{tpu_custom_call.1} parent=1 // pred_region
      %78 = dma.done [#allocation6], 1024
    $region53: #{tpu_custom_call.1} parent=1 // pred_fallthru
      _
    %v79 = vld [vmem:[%s0] sm:$0xff]
    %v80 = vld [vmem:[%s0 + $0x8] sm:$0xff]
    %v81 = vld [vmem:[#allocation2] sm:$0xff]
    %v82 = vld [vmem:[#allocation2 + $0x8] sm:$0xff]
    %v83 = vld [vmem:[#allocation5] sm:$0x1]
    %v85 = vlaneseq
    %v86 = vshrl.u32 %v85, 7
    %v87 = vsub.s32 0, %v86
    %v88 = vrot.slane %v83, %v87
    %vm90 = vcmask 130048
    %v92 = vsel %vm90, %v79, 0
    %v95 = vsel %vm90, %v80, 0
    %97 = vmatprep.subr.mxu0 0.0
    %98 = vmatpush1.msra.mxu0 %v81
    %99 = vmatprep.subr.mxu0 0.0
    %100 = vmatpush1.msra.mxu0 %v82
    %101 = vmatprep.subr.mxu0 0.0
    %102 = vmatpush1.msra.mxu0 0.0
    %103 = vmatprep.subr.mxu0 0.0
    %104 = vmatpush1.msra.mxu0 0.0
    %105 = vmatprep.subr.mxu0 0.0
    %106 = vmatpush1.msra.mxu0 0.0
    %107 = vmatprep.subr.mxu0 0.0
    %108 = vmatpush1.msra.mxu0 0.0
    %109 = vmatprep.subr.mxu0 0.0
    %110 = vmatpush1.msra.mxu0 0.0
    %111 = vmatprep.subr.mxu0 0.0
    %112 = vmatpush1.msra.mxu0 0.0
    %113 = vmatprep.subr.mxu0 0.0
    %114 = vmatpush1.msra.mxu0 0.0
    %115 = vmatprep.subr.mxu0 0.0
    %116 = vmatpush1.msra.mxu0 0.0
    %117 = vmatprep.subr.mxu0 0.0
    %118 = vmatpush1.msra.mxu0 0.0
    %119 = vmatprep.subr.mxu0 0.0
    %120 = vmatpush1.msra.mxu0 0.0
    %121 = vmatprep.subr.mxu0 0.0
    %122 = vmatpush1.msra.mxu0 0.0
    %123 = vmatprep.subr.mxu0 0.0
    %124 = vmatpush1.msra.mxu0 0.0
    %125 = vmatprep.subr.mxu0 0.0
    %126 = vmatpush1.msra.mxu0 0.0
    %127 = vmatprep.subr.mxu0 0.0
    %128 = vmatpush1.msra.mxu0 0.0
    %129 = vmatprep.subr.mxu0 0.0
    %130 = vmatpush1.msra.mxu0 0.0
    %131 = vmatprep.subr.mxu0 0.0
    %132 = vmatpush1.msra.mxu0 0.0
    %133 = vmatprep.subr.mxu0 0.0
    %134 = vmatpush1.msra.mxu0 0.0
    %135 = vmatprep.subr.mxu0 0.0
    %136 = vmatpush1.msra.mxu0 0.0
    %137 = vmatprep.subr.mxu0 0.0
    %138 = vmatpush1.msra.mxu0 0.0
    %139 = vmatprep.subr.mxu0 0.0
    %140 = vmatpush1.msra.mxu0 0.0
    %141 = vmatprep.subr.mxu0 0.0
    %142 = vmatpush1.msra.mxu0 0.0
    %143 = vmatprep.subr.mxu0 0.0
    %144 = vmatpush1.msra.mxu0 0.0
    %145 = vmatprep.subr.mxu0 0.0
    %146 = vmatpush1.msra.mxu0 0.0
    %147 = vmatprep.subr.mxu0 0.0
    %148 = vmatpush1.msra.mxu0 0.0
    %149 = vmatprep.subr.mxu0 0.0
    %150 = vmatpush1.msra.mxu0 0.0
    %151 = vmatprep.subr.mxu0 0.0
    %152 = vmatpush1.msra.mxu0 0.0
    %153 = vmatprep.subr.mxu0 0.0
    %154 = vmatpush1.msra.mxu0 0.0
    %155 = vmatprep.subr.mxu0 0.0
    %156 = vmatpush1.msra.mxu0 0.0
    %157 = vmatprep.subr.mxu0 0.0
    %158 = vmatpush1.msra.mxu0 0.0
    %159 = vmatprep.subr.mxu0 0.0
    %160 = vmatpush1.msra.mxu0 0.0
    %161 = vmatprep.mubr.f32.mxu0 0.0
    %162 = vmatmul.mubr.f32.gmra.mrb[0].mxu0 %v92
    %v163 = vpop.f32.mrb[0].mxu0
    %v164 = vadd.f32 %v88, %v163
    %v165 = vpop.f32.mrb[0].mxu0
    %166 = vmatprep.mubr.f32.mxu0 0.0
    %167 = vmatmul.mubr.f32.gmra.mrb[0].mxu0 %v95
    %v168 = vpop.f32.mrb[0].mxu0
    %v169 = vadd.f32 %v88, %v168
    %v170 = vpop.f32.mrb[0].mxu0
    %171 = vdwg.mxu0
    %v172 = vld [vmem:[#allocation7] sm:$0xff]
    %v173 = vld [vmem:[#allocation7 + $0x8] sm:$0xff]
    %v174 = vld [vmem:[#allocation7 + $0x10] sm:$0xff]
    %v175 = vld [vmem:[#allocation7 + $0x18] sm:$0xff]
    %v176 = vld [vmem:[#allocation7 + $0x20] sm:$0xff]
    %v177 = vld [vmem:[#allocation7 + $0x28] sm:$0xff]
    %v178 = vld [vmem:[#allocation7 + $0x30] sm:$0xff]
    %v179 = vld [vmem:[#allocation7 + $0x38] sm:$0xff]
    %v180 = vld [vmem:[%s6] sm:$0xff]
    %v181 = vld [vmem:[%s6 + $0x8] sm:$0xff]
    %v182 = vld [vmem:[%s6 + $0x10] sm:$0xff]
    %v183 = vld [vmem:[%s6 + $0x18] sm:$0xff]
    %v184 = vld [vmem:[%s7] sm:$0x3]
    %v185 = vld [vmem:[%s1] sm:$0x3]
    %v186 = vld [vmem:[%s2] sm:$0x3]
    %s187 = scalar_lea.vmem %s1, 2
    %v188 = vld [vmem:[%s187] sm:$0x3]
    %s189 = scalar_lea.vmem %s2, 2
    %v190 = vld [vmem:[%s189] sm:$0x3]
    %vm191 = vcmask 261120
    %v193 = vsel %vm191, %v185, 0
    %195 = vmatprep.subr.mxu0 %v173
    %196 = vmatpush1.msra.mxu0 %v172
    %197 = vmatprep.subr.mxu0 %v175
    %198 = vmatpush1.msra.mxu0 %v174
    %199 = vmatprep.subr.mxu0 %v177
    %200 = vmatpush1.msra.mxu0 %v176
    %201 = vmatprep.subr.mxu0 %v179
    %202 = vmatpush1.msra.mxu0 %v178
    %203 = vmatprep.subr.mxu0 0.0
    %204 = vmatpush1.msra.mxu0 0.0
    %205 = vmatprep.subr.mxu0 0.0
    %206 = vmatpush1.msra.mxu0 0.0
    %207 = vmatprep.subr.mxu0 0.0
    %208 = vmatpush1.msra.mxu0 0.0
    %209 = vmatprep.subr.mxu0 0.0
    %210 = vmatpush1.msra.mxu0 0.0
    %211 = vmatprep.subr.mxu0 0.0
    %212 = vmatpush1.msra.mxu0 0.0
    %213 = vmatprep.subr.mxu0 0.0
    %214 = vmatpush1.msra.mxu0 0.0
    %215 = vmatprep.subr.mxu0 0.0
    %216 = vmatpush1.msra.mxu0 0.0
    %217 = vmatprep.subr.mxu0 0.0
    %218 = vmatpush1.msra.mxu0 0.0
    %219 = vmatprep.subr.mxu0 0.0
    %220 = vmatpush1.msra.mxu0 0.0
    %221 = vmatprep.subr.mxu0 0.0
    %222 = vmatpush1.msra.mxu0 0.0
    %223 = vmatprep.subr.mxu0 0.0
    %224 = vmatpush1.msra.mxu0 0.0
    %225 = vmatprep.subr.mxu0 0.0
    %226 = vmatpush1.msra.mxu0 0.0
    %227 = vmatprep.subr.mxu0 0.0
    %228 = vmatpush1.msra.mxu0 0.0
    %229 = vmatprep.subr.mxu0 0.0
    %230 = vmatpush1.msra.mxu0 0.0
    %231 = vmatprep.subr.mxu0 0.0
    %232 = vmatpush1.msra.mxu0 0.0
    %233 = vmatprep.subr.mxu0 0.0
    %234 = vmatpush1.msra.mxu0 0.0
    %235 = vmatprep.subr.mxu0 0.0
    %236 = vmatpush1.msra.mxu0 0.0
    %237 = vmatprep.subr.mxu0 0.0
    %238 = vmatpush1.msra.mxu0 0.0
    %239 = vmatprep.subr.mxu0 0.0
    %240 = vmatpush1.msra.mxu0 0.0
    %241 = vmatprep.subr.mxu0 0.0
    %242 = vmatpush1.msra.mxu0 0.0
    %243 = vmatprep.subr.mxu0 0.0
    %244 = vmatpush1.msra.mxu0 0.0
    %245 = vmatprep.subr.mxu0 0.0
    %246 = vmatpush1.msra.mxu0 0.0
    %247 = vmatprep.subr.mxu0 0.0
    %248 = vmatpush1.msra.mxu0 0.0
    %249 = vmatprep.subr.mxu0 0.0
    %250 = vmatpush1.msra.mxu0 0.0
    %251 = vmatprep.subr.mxu0 0.0
    %252 = vmatpush1.msra.mxu0 0.0
    %253 = vmatprep.subr.mxu0 0.0
    %254 = vmatpush1.msra.mxu0 0.0
    %255 = vmatprep.subr.mxu0 0.0
    %256 = vmatpush1.msra.mxu0 0.0
    %257 = vmatprep.subr.mxu0 0.0
    %258 = vmatpush1.msra.mxu0 0.0
    %259 = vmatprep.mubr.f32.mxu0 0.0
    %260 = vmatmul.mubr.f32.gmra.mrb[0].mxu0 %v193
    %v261 = vpop.f32.mrb[0].mxu0
    %v262 = vadd.f32 0.0, %v261
    %v263 = vpop.f32.mrb[0].mxu0
    %264 = vdwg.mxu0
    %v265 = vadd.f32 %v262, %v164
    %v266 = vxor.u32 %v265, 2147483648
    %v267 = vmul.f32 %v266, 1.442695
    %v268 = vpow.pop %v267
    %v269 = vadd.f32 %v268, 1.0
    %v270 = vrcp.pop %v269
    %v271 = vmul.f32 1.0, %v270
    %v272 = vtanh.pop %v265
    %274 = vrot.lane.b32.xlu0 %v186, 32
    %v275 = vpop.permute.xlu0 %274
    %v277 = vmul.f32 %v271, %v275
    %279 = vrot.lane.b32.xlu0 %v272, 64
    %v280 = vpop.permute.xlu0 %279
    %v282 = vmul.f32 %v271, %v280
    %284 = vrot.lane.b32.xlu0 %v282, 32
    %v285 = vpop.permute.xlu0 %284
    %v287 = vadd.f32 %v277, %v285
    %v288 = vtanh.pop %v287
    %290 = vrot.lane.b32.xlu0 %v288, 64
    %v291 = vpop.permute.xlu0 %290
    %v293 = vmul.f32 %v271, %v291
    %295 = vrot.lane.b32.xlu0 %v293, 32
    %v296 = vpop.permute.xlu0 %295
    %v297 = vsel %vm191, %v296, 0
    %299 = vmatprep.subr.mxu0 %v173
    %300 = vmatpush1.msra.mxu0 %v172
    %301 = vmatprep.subr.mxu0 %v175
    %302 = vmatpush1.msra.mxu0 %v174
    %303 = vmatprep.subr.mxu0 %v177
    %304 = vmatpush1.msra.mxu0 %v176
    %305 = vmatprep.subr.mxu0 %v179
    %306 = vmatpush1.msra.mxu0 %v178
    %307 = vmatprep.subr.mxu0 0.0
    %308 = vmatpush1.msra.mxu0 0.0
    %309 = vmatprep.subr.mxu0 0.0
    %310 = vmatpush1.msra.mxu0 0.0
    %311 = vmatprep.subr.mxu0 0.0
    %312 = vmatpush1.msra.mxu0 0.0
    %313 = vmatprep.subr.mxu0 0.0
    %314 = vmatpush1.msra.mxu0 0.0
    %315 = vmatprep.subr.mxu0 0.0
    %316 = vmatpush1.msra.mxu0 0.0
    %317 = vmatprep.subr.mxu0 0.0
    %318 = vmatpush1.msra.mxu0 0.0
    %319 = vmatprep.subr.mxu0 0.0
    %320 = vmatpush1.msra.mxu0 0.0
    %321 = vmatprep.subr.mxu0 0.0
    %322 = vmatpush1.msra.mxu0 0.0
    %323 = vmatprep.subr.mxu0 0.0
    %324 = vmatpush1.msra.mxu0 0.0
    %325 = vmatprep.subr.mxu0 0.0
    %326 = vmatpush1.msra.mxu0 0.0
    %327 = vmatprep.subr.mxu0 0.0
    %328 = vmatpush1.msra.mxu0 0.0
    %329 = vmatprep.subr.mxu0 0.0
    %330 = vmatpush1.msra.mxu0 0.0
    %331 = vmatprep.subr.mxu0 0.0
    %332 = vmatpush1.msra.mxu0 0.0
    %333 = vmatprep.subr.mxu0 0.0
    %334 = vmatpush1.msra.mxu0 0.0
    %335 = vmatprep.subr.mxu0 0.0
    %336 = vmatpush1.msra.mxu0 0.0
    %337 = vmatprep.subr.mxu0 0.0
    %338 = vmatpush1.msra.mxu0 0.0
    %339 = vmatprep.subr.mxu0 0.0
    %340 = vmatpush1.msra.mxu0 0.0
    %341 = vmatprep.subr.mxu0 0.0
    %342 = vmatpush1.msra.mxu0 0.0
    %343 = vmatprep.subr.mxu0 0.0
    %344 = vmatpush1.msra.mxu0 0.0
    %345 = vmatprep.subr.mxu0 0.0
    %346 = vmatpush1.msra.mxu0 0.0
    %347 = vmatprep.subr.mxu0 0.0
    %348 = vmatpush1.msra.mxu0 0.0
    %349 = vmatprep.subr.mxu0 0.0
    %350 = vmatpush1.msra.mxu0 0.0
    %351 = vmatprep.subr.mxu0 0.0
    %352 = vmatpush1.msra.mxu0 0.0
    %353 = vmatprep.subr.mxu0 0.0
    %354 = vmatpush1.msra.mxu0 0.0
    %355 = vmatprep.subr.mxu0 0.0
    %356 = vmatpush1.msra.mxu0 0.0
    %357 = vmatprep.subr.mxu0 0.0
    %358 = vmatpush1.msra.mxu0 0.0
    %359 = vmatprep.subr.mxu0 0.0
    %360 = vmatpush1.msra.mxu0 0.0
    %361 = vmatprep.subr.mxu0 0.0
    %362 = vmatpush1.msra.mxu0 0.0
    %363 = vmatprep.mubr.f32.mxu0 0.0
    %364 = vmatmul.mubr.f32.gmra.mrb[0].mxu0 %v297
    %v365 = vpop.f32.mrb[0].mxu0
    %v366 = vadd.f32 0.0, %v365
    %v367 = vpop.f32.mrb[0].mxu0
    %v368 = vadd.f32 0.0, %v367
    %369 = vdwg.mxu0
    %v371 = vsel %vm191, %v188, 0
    %373 = vmatprep.subr.mxu0 0.0
    %374 = vmatpush1.msra.mxu0 %v180
    %375 = vmatprep.subr.mxu0 0.0
    %376 = vmatpush1.msra.mxu0 %v181
    %377 = vmatprep.subr.mxu0 0.0
    %378 = vmatpush1.msra.mxu0 %v182
    %379 = vmatprep.subr.mxu0 0.0
    %380 = vmatpush1.msra.mxu0 %v183
    %381 = vmatprep.subr.mxu0 0.0
    %382 = vmatpush1.msra.mxu0 0.0
    %383 = vmatprep.subr.mxu0 0.0
    %384 = vmatpush1.msra.mxu0 0.0
    %385 = vmatprep.subr.mxu0 0.0
    %386 = vmatpush1.msra.mxu0 0.0
    %387 = vmatprep.subr.mxu0 0.0
    %388 = vmatpush1.msra.mxu0 0.0
    %389 = vmatprep.subr.mxu0 0.0
    %390 = vmatpush1.msra.mxu0 0.0
    %391 = vmatprep.subr.mxu0 0.0
    %392 = vmatpush1.msra.mxu0 0.0
    %393 = vmatprep.subr.mxu0 0.0
    %394 = vmatpush1.msra.mxu0 0.0
    %395 = vmatprep.subr.mxu0 0.0
    %396 = vmatpush1.msra.mxu0 0.0
    %397 = vmatprep.subr.mxu0 0.0
    %398 = vmatpush1.msra.mxu0 0.0
    %399 = vmatprep.subr.mxu0 0.0
    %400 = vmatpush1.msra.mxu0 0.0
    %401 = vmatprep.subr.mxu0 0.0
    %402 = vmatpush1.msra.mxu0 0.0
    %403 = vmatprep.subr.mxu0 0.0
    %404 = vmatpush1.msra.mxu0 0.0
    %405 = vmatprep.subr.mxu0 0.0
    %406 = vmatpush1.msra.mxu0 0.0
    %407 = vmatprep.subr.mxu0 0.0
    %408 = vmatpush1.msra.mxu0 0.0
    %409 = vmatprep.subr.mxu0 0.0
    %410 = vmatpush1.msra.mxu0 0.0
    %411 = vmatprep.subr.mxu0 0.0
    %412 = vmatpush1.msra.mxu0 0.0
    %413 = vmatprep.subr.mxu0 0.0
    %414 = vmatpush1.msra.mxu0 0.0
    %415 = vmatprep.subr.mxu0 0.0
    %416 = vmatpush1.msra.mxu0 0.0
    %417 = vmatprep.subr.mxu0 0.0
    %418 = vmatpush1.msra.mxu0 0.0
    %419 = vmatprep.subr.mxu0 0.0
    %420 = vmatpush1.msra.mxu0 0.0
    %421 = vmatprep.subr.mxu0 0.0
    %422 = vmatpush1.msra.mxu0 0.0
    %423 = vmatprep.subr.mxu0 0.0
    %424 = vmatpush1.msra.mxu0 0.0
    %425 = vmatprep.subr.mxu0 0.0
    %426 = vmatpush1.msra.mxu0 0.0
    %427 = vmatprep.subr.mxu0 0.0
    %428 = vmatpush1.msra.mxu0 0.0
    %429 = vmatprep.subr.mxu0 0.0
    %430 = vmatpush1.msra.mxu0 0.0
    %431 = vmatprep.subr.mxu0 0.0
    %432 = vmatpush1.msra.mxu0 0.0
    %433 = vmatprep.subr.mxu0 0.0
    %434 = vmatpush1.msra.mxu0 0.0
    %435 = vmatprep.subr.mxu0 0.0
    %436 = vmatpush1.msra.mxu0 0.0
    %437 = vmatprep.mubr.f32.mxu0 0.0
    %438 = vmatmul.mubr.f32.gmra.mrb[0].mxu0 %v371
    %v439 = vpop.f32.mrb[0].mxu0
    %v440 = vadd.f32 0.0, %v439
    %v441 = vpop.f32.mrb[0].mxu0
    %442 = vdwg.mxu0
    %v443 = vadd.f32 %v368, %v440
    %v444 = vadd.f32 %v443, %v184
    %v446 = vrot.slane %v164, 2
    %v448 = vadd.f32 %v366, %v446
    %v449 = vxor.u32 %v448, 2147483648
    %v450 = vmul.f32 %v449, 1.442695
    %v451 = vpow.pop %v450
    %v452 = vadd.f32 %v451, 1.0
    %v453 = vrcp.pop %v452
    %v454 = vmul.f32 1.0, %v453
    %v455 = vtanh.pop %v448
    %v456 = vmul.f32 %v454, %v287
    %458 = vrot.lane.b32.xlu0 %v455, 64
    %v459 = vpop.permute.xlu0 %458
    %v461 = vmul.f32 %v454, %v459
    %463 = vrot.lane.b32.xlu0 %v461, 32
    %v464 = vpop.permute.xlu0 %463
    %v466 = vadd.f32 %v456, %v464
    %v467 = vtanh.pop %v466
    %469 = vrot.lane.b32.xlu0 %v467, 64
    %v470 = vpop.permute.xlu0 %469
    %v472 = vmul.f32 %v454, %v470
    %v473 = vxor.u32 %v444, 2147483648
    %v474 = vmul.f32 %v473, 1.442695
    %v475 = vpow.pop %v474
    %v476 = vadd.f32 %v475, 1.0
    %v477 = vrcp.pop %v476
    %v478 = vmul.f32 1.0, %v477
    %v479 = vtanh.pop %v444
    %481 = vrot.lane.b32.xlu0 %v190, 32
    %v482 = vpop.permute.xlu0 %481
    %v484 = vmul.f32 %v478, %v482
    %486 = vrot.lane.b32.xlu0 %v479, 64
    %v487 = vpop.permute.xlu0 %486
    %v489 = vmul.f32 %v478, %v487
    %491 = vrot.lane.b32.xlu0 %v489, 32
    %v492 = vpop.permute.xlu0 %491
    %v494 = vadd.f32 %v484, %v492
    %v495 = vtanh.pop %v494
    %497 = vrot.lane.b32.xlu0 %v495, 64
    %v498 = vpop.permute.xlu0 %497
    %v500 = vmul.f32 %v478, %v498
    %502 = vrot.lane.b32.xlu0 %v472, 32
    %v503 = vpop.permute.xlu0 %502
    %v504 = vsel %vm191, %v503, 0
    %506 = vmatprep.subr.mxu0 %v173
    %507 = vmatpush1.msra.mxu0 %v172
    %508 = vmatprep.subr.mxu0 %v175
    %509 = vmatpush1.msra.mxu0 %v174
    %510 = vmatprep.subr.mxu0 %v177
    %511 = vmatpush1.msra.mxu0 %v176
    %512 = vmatprep.subr.mxu0 %v179
    %513 = vmatpush1.msra.mxu0 %v178
    %514 = vmatprep.subr.mxu0 0.0
    %515 = vmatpush1.msra.mxu0 0.0
    %516 = vmatprep.subr.mxu0 0.0
    %517 = vmatpush1.msra.mxu0 0.0
    %518 = vmatprep.subr.mxu0 0.0
    %519 = vmatpush1.msra.mxu0 0.0
    %520 = vmatprep.subr.mxu0 0.0
    %521 = vmatpush1.msra.mxu0 0.0
    %522 = vmatprep.subr.mxu0 0.0
    %523 = vmatpush1.msra.mxu0 0.0
    %524 = vmatprep.subr.mxu0 0.0
    %525 = vmatpush1.msra.mxu0 0.0
    %526 = vmatprep.subr.mxu0 0.0
    %527 = vmatpush1.msra.mxu0 0.0
    %528 = vmatprep.subr.mxu0 0.0
    %529 = vmatpush1.msra.mxu0 0.0
    %530 = vmatprep.subr.mxu0 0.0
    %531 = vmatpush1.msra.mxu0 0.0
    %532 = vmatprep.subr.mxu0 0.0
    %533 = vmatpush1.msra.mxu0 0.0
    %534 = vmatprep.subr.mxu0 0.0
    %535 = vmatpush1.msra.mxu0 0.0
    %536 = vmatprep.subr.mxu0 0.0
    %537 = vmatpush1.msra.mxu0 0.0
    %538 = vmatprep.subr.mxu0 0.0
    %539 = vmatpush1.msra.mxu0 0.0
    %540 = vmatprep.subr.mxu0 0.0
    %541 = vmatpush1.msra.mxu0 0.0
    %542 = vmatprep.subr.mxu0 0.0
    %543 = vmatpush1.msra.mxu0 0.0
    %544 = vmatprep.subr.mxu0 0.0
    %545 = vmatpush1.msra.mxu0 0.0
    %546 = vmatprep.subr.mxu0 0.0
    %547 = vmatpush1.msra.mxu0 0.0
    %548 = vmatprep.subr.mxu0 0.0
    %549 = vmatpush1.msra.mxu0 0.0
    %550 = vmatprep.subr.mxu0 0.0
    %551 = vmatpush1.msra.mxu0 0.0
    %552 = vmatprep.subr.mxu0 0.0
    %553 = vmatpush1.msra.mxu0 0.0
    %554 = vmatprep.subr.mxu0 0.0
    %555 = vmatpush1.msra.mxu0 0.0
    %556 = vmatprep.subr.mxu0 0.0
    %557 = vmatpush1.msra.mxu0 0.0
    %558 = vmatprep.subr.mxu0 0.0
    %559 = vmatpush1.msra.mxu0 0.0
    %560 = vmatprep.subr.mxu0 0.0
    %561 = vmatpush1.msra.mxu0 0.0
    %562 = vmatprep.subr.mxu0 0.0
    %563 = vmatpush1.msra.mxu0 0.0
    %564 = vmatprep.subr.mxu0 0.0
    %565 = vmatpush1.msra.mxu0 0.0
    %566 = vmatprep.subr.mxu0 0.0
    %567 = vmatpush1.msra.mxu0 0.0
    %568 = vmatprep.subr.mxu0 0.0
    %569 = vmatpush1.msra.mxu0 0.0
    %570 = vmatprep.mubr.f32.mxu0 0.0
    %571 = vmatmul.mubr.f32.gmra.mrb[0].mxu0 %v504
    %v572 = vpop.f32.mrb[0].mxu0
    %v573 = vadd.f32 0.0, %v572
    %v574 = vpop.f32.mrb[0].mxu0
    %v575 = vadd.f32 0.0, %v574
    %576 = vdwg.mxu0
    %578 = vrot.lane.b32.xlu0 %v500, 32
    %v579 = vpop.permute.xlu0 %578
    %v580 = vsel %vm191, %v579, 0
    %582 = vmatprep.subr.mxu0 0.0
    %583 = vmatpush1.msra.mxu0 %v180
    %584 = vmatprep.subr.mxu0 0.0
    %585 = vmatpush1.msra.mxu0 %v181
    %586 = vmatprep.subr.mxu0 0.0
    %587 = vmatpush1.msra.mxu0 %v182
    %588 = vmatprep.subr.mxu0 0.0
    %589 = vmatpush1.msra.mxu0 %v183
    %590 = vmatprep.subr.mxu0 0.0
    %591 = vmatpush1.msra.mxu0 0.0
    %592 = vmatprep.subr.mxu0 0.0
    %593 = vmatpush1.msra.mxu0 0.0
    %594 = vmatprep.subr.mxu0 0.0
    %595 = vmatpush1.msra.mxu0 0.0
    %596 = vmatprep.subr.mxu0 0.0
    %597 = vmatpush1.msra.mxu0 0.0
    %598 = vmatprep.subr.mxu0 0.0
    %599 = vmatpush1.msra.mxu0 0.0
    %600 = vmatprep.subr.mxu0 0.0
    %601 = vmatpush1.msra.mxu0 0.0
    %602 = vmatprep.subr.mxu0 0.0
    %603 = vmatpush1.msra.mxu0 0.0
    %604 = vmatprep.subr.mxu0 0.0
    %605 = vmatpush1.msra.mxu0 0.0
    %606 = vmatprep.subr.mxu0 0.0
    %607 = vmatpush1.msra.mxu0 0.0
    %608 = vmatprep.subr.mxu0 0.0
    %609 = vmatpush1.msra.mxu0 0.0
    %610 = vmatprep.subr.mxu0 0.0
    %611 = vmatpush1.msra.mxu0 0.0
    %612 = vmatprep.subr.mxu0 0.0
    %613 = vmatpush1.msra.mxu0 0.0
    %614 = vmatprep.subr.mxu0 0.0
    %615 = vmatpush1.msra.mxu0 0.0
    %616 = vmatprep.subr.mxu0 0.0
    %617 = vmatpush1.msra.mxu0 0.0
    %618 = vmatprep.subr.mxu0 0.0
    %619 = vmatpush1.msra.mxu0 0.0
    %620 = vmatprep.subr.mxu0 0.0
    %621 = vmatpush1.msra.mxu0 0.0
    %622 = vmatprep.subr.mxu0 0.0
    %623 = vmatpush1.msra.mxu0 0.0
    %624 = vmatprep.subr.mxu0 0.0
    %625 = vmatpush1.msra.mxu0 0.0
    %626 = vmatprep.subr.mxu0 0.0
    %627 = vmatpush1.msra.mxu0 0.0
    %628 = vmatprep.subr.mxu0 0.0
    %629 = vmatpush1.msra.mxu0 0.0
    %630 = vmatprep.subr.mxu0 0.0
    %631 = vmatpush1.msra.mxu0 0.0
    %632 = vmatprep.subr.mxu0 0.0
    %633 = vmatpush1.msra.mxu0 0.0
    %634 = vmatprep.subr.mxu0 0.0
    %635 = vmatpush1.msra.mxu0 0.0
    %636 = vmatprep.subr.mxu0 0.0
    %637 = vmatpush1.msra.mxu0 0.0
    %638 = vmatprep.subr.mxu0 0.0
    %639 = vmatpush1.msra.mxu0 0.0
    %640 = vmatprep.subr.mxu0 0.0
    %641 = vmatpush1.msra.mxu0 0.0
    %642 = vmatprep.subr.mxu0 0.0
    %643 = vmatpush1.msra.mxu0 0.0
    %644 = vmatprep.subr.mxu0 0.0
    %645 = vmatpush1.msra.mxu0 0.0
    %646 = vmatprep.mubr.f32.mxu0 0.0
    %647 = vmatmul.mubr.f32.gmra.mrb[0].mxu0 %v580
    %v648 = vpop.f32.mrb[0].mxu0
    %v649 = vadd.f32 0.0, %v648
    %v650 = vpop.f32.mrb[0].mxu0
    %651 = vdwg.mxu0
    %v652 = vadd.f32 %v575, %v649
    %v653 = vadd.f32 %v652, %v184
    %v654 = vrot.slane %v164, 4
    %v656 = vadd.f32 %v573, %v654
    %v657 = vxor.u32 %v656, 2147483648
    %v658 = vmul.f32 %v657, 1.442695
    %v659 = vpow.pop %v658
    %v660 = vadd.f32 %v659, 1.0
    %v661 = vrcp.pop %v660
    %v662 = vmul.f32 1.0, %v661
    %v663 = vtanh.pop %v656
    %v664 = vmul.f32 %v662, %v466
    %666 = vrot.lane.b32.xlu0 %v663, 64
    %v667 = vpop.permute.xlu0 %666
    %v669 = vmul.f32 %v662, %v667
    %671 = vrot.lane.b32.xlu0 %v669, 32
    %v672 = vpop.permute.xlu0 %671
    %v674 = vadd.f32 %v664, %v672
    %v675 = vtanh.pop %v674
    %677 = vrot.lane.b32.xlu0 %v675, 64
    %v678 = vpop.permute.xlu0 %677
    %v680 = vmul.f32 %v662, %v678
    %v681 = vxor.u32 %v653, 2147483648
    %v682 = vmul.f32 %v681, 1.442695
    %v683 = vpow.pop %v682
    %v684 = vadd.f32 %v683, 1.0
    %v685 = vrcp.pop %v684
    %v686 = vmul.f32 1.0, %v685
    %v687 = vtanh.pop %v653
    %v688 = vmul.f32 %v686, %v494
    %690 = vrot.lane.b32.xlu0 %v687, 64
    %v691 = vpop.permute.xlu0 %690
    %v693 = vmul.f32 %v686, %v691
    %695 = vrot.lane.b32.xlu0 %v693, 32
    %v696 = vpop.permute.xlu0 %695
    %v698 = vadd.f32 %v688, %v696
    %v699 = vtanh.pop %v698
    %701 = vrot.lane.b32.xlu0 %v699, 64
    %v702 = vpop.permute.xlu0 %701
    %v704 = vmul.f32 %v686, %v702
    %706 = vrot.lane.b32.xlu0 %v680, 32
    %v707 = vpop.permute.xlu0 %706
    %v708 = vsel %vm191, %v707, 0
    %710 = vmatprep.subr.mxu0 %v173
    %711 = vmatpush1.msra.mxu0 %v172
    %712 = vmatprep.subr.mxu0 %v175
    %713 = vmatpush1.msra.mxu0 %v174
    %714 = vmatprep.subr.mxu0 %v177
    %715 = vmatpush1.msra.mxu0 %v176
    %716 = vmatprep.subr.mxu0 %v179
    %717 = vmatpush1.msra.mxu0 %v178
    %718 = vmatprep.subr.mxu0 0.0
    %719 = vmatpush1.msra.mxu0 0.0
    %720 = vmatprep.subr.mxu0 0.0
    %721 = vmatpush1.msra.mxu0 0.0
    %722 = vmatprep.subr.mxu0 0.0
    %723 = vmatpush1.msra.mxu0 0.0
    %724 = vmatprep.subr.mxu0 0.0
    %725 = vmatpush1.msra.mxu0 0.0
    %726 = vmatprep.subr.mxu0 0.0
    %727 = vmatpush1.msra.mxu0 0.0
    %728 = vmatprep.subr.mxu0 0.0
    %729 = vmatpush1.msra.mxu0 0.0
    %730 = vmatprep.subr.mxu0 0.0
    %731 = vmatpush1.msra.mxu0 0.0
    %732 = vmatprep.subr.mxu0 0.0
    %733 = vmatpush1.msra.mxu0 0.0
    %734 = vmatprep.subr.mxu0 0.0
    %735 = vmatpush1.msra.mxu0 0.0
    %736 = vmatprep.subr.mxu0 0.0
    %737 = vmatpush1.msra.mxu0 0.0
    %738 = vmatprep.subr.mxu0 0.0
    %739 = vmatpush1.msra.mxu0 0.0
    %740 = vmatprep.subr.mxu0 0.0
    %741 = vmatpush1.msra.mxu0 0.0
    %742 = vmatprep.subr.mxu0 0.0
    %743 = vmatpush1.msra.mxu0 0.0
    %744 = vmatprep.subr.mxu0 0.0
    %745 = vmatpush1.msra.mxu0 0.0
    %746 = vmatprep.subr.mxu0 0.0
    %747 = vmatpush1.msra.mxu0 0.0
    %748 = vmatprep.subr.mxu0 0.0
    %749 = vmatpush1.msra.mxu0 0.0
    %750 = vmatprep.subr.mxu0 0.0
    %751 = vmatpush1.msra.mxu0 0.0
    %752 = vmatprep.subr.mxu0 0.0
    %753 = vmatpush1.msra.mxu0 0.0
    %754 = vmatprep.subr.mxu0 0.0
    %755 = vmatpush1.msra.mxu0 0.0
    %756 = vmatprep.subr.mxu0 0.0
    %757 = vmatpush1.msra.mxu0 0.0
    %758 = vmatprep.subr.mxu0 0.0
    %759 = vmatpush1.msra.mxu0 0.0
    %760 = vmatprep.subr.mxu0 0.0
    %761 = vmatpush1.msra.mxu0 0.0
    %762 = vmatprep.subr.mxu0 0.0
    %763 = vmatpush1.msra.mxu0 0.0
    %764 = vmatprep.subr.mxu0 0.0
    %765 = vmatpush1.msra.mxu0 0.0
    %766 = vmatprep.subr.mxu0 0.0
    %767 = vmatpush1.msra.mxu0 0.0
    %768 = vmatprep.subr.mxu0 0.0
    %769 = vmatpush1.msra.mxu0 0.0
    %770 = vmatprep.subr.mxu0 0.0
    %771 = vmatpush1.msra.mxu0 0.0
    %772 = vmatprep.subr.mxu0 0.0
    %773 = vmatpush1.msra.mxu0 0.0
    %774 = vmatprep.mubr.f32.mxu0 0.0
    %775 = vmatmul.mubr.f32.gmra.mrb[0].mxu0 %v708
    %v776 = vpop.f32.mrb[0].mxu0
    %v777 = vadd.f32 0.0, %v776
    %v778 = vpop.f32.mrb[0].mxu0
    %v779 = vadd.f32 0.0, %v778
    %780 = vdwg.mxu0
    %782 = vrot.lane.b32.xlu0 %v704, 32
    %v783 = vpop.permute.xlu0 %782
    %v784 = vsel %vm191, %v783, 0
    %786 = vmatprep.subr.mxu0 0.0
    %787 = vmatpush1.msra.mxu0 %v180
    %788 = vmatprep.subr.mxu0 0.0
    %789 = vmatpush1.msra.mxu0 %v181
    %790 = vmatprep.subr.mxu0 0.0
    %791 = vmatpush1.msra.mxu0 %v182
    %792 = vmatprep.subr.mxu0 0.0
    %793 = vmatpush1.msra.mxu0 %v183
    %794 = vmatprep.subr.mxu0 0.0
    %795 = vmatpush1.msra.mxu0 0.0
    %796 = vmatprep.subr.mxu0 0.0
    %797 = vmatpush1.msra.mxu0 0.0
    %798 = vmatprep.subr.mxu0 0.0
    %799 = vmatpush1.msra.mxu0 0.0
    %800 = vmatprep.subr.mxu0 0.0
    %801 = vmatpush1.msra.mxu0 0.0
    %802 = vmatprep.subr.mxu0 0.0
    %803 = vmatpush1.msra.mxu0 0.0
    %804 = vmatprep.subr.mxu0 0.0
    %805 = vmatpush1.msra.mxu0 0.0
    %806 = vmatprep.subr.mxu0 0.0
    %807 = vmatpush1.msra.mxu0 0.0
    %808 = vmatprep.subr.mxu0 0.0
    %809 = vmatpush1.msra.mxu0 0.0
    %810 = vmatprep.subr.mxu0 0.0
    %811 = vmatpush1.msra.mxu0 0.0
    %812 = vmatprep.subr.mxu0 0.0
    %813 = vmatpush1.msra.mxu0 0.0
    %814 = vmatprep.subr.mxu0 0.0
    %815 = vmatpush1.msra.mxu0 0.0
    %816 = vmatprep.subr.mxu0 0.0
    %817 = vmatpush1.msra.mxu0 0.0
    %818 = vmatprep.subr.mxu0 0.0
    %819 = vmatpush1.msra.mxu0 0.0
    %820 = vmatprep.subr.mxu0 0.0
    %821 = vmatpush1.msra.mxu0 0.0
    %822 = vmatprep.subr.mxu0 0.0
    %823 = vmatpush1.msra.mxu0 0.0
    %824 = vmatprep.subr.mxu0 0.0
    %825 = vmatpush1.msra.mxu0 0.0
    %826 = vmatprep.subr.mxu0 0.0
    %827 = vmatpush1.msra.mxu0 0.0
    %828 = vmatprep.subr.mxu0 0.0
    %829 = vmatpush1.msra.mxu0 0.0
    %830 = vmatprep.subr.mxu0 0.0
    %831 = vmatpush1.msra.mxu0 0.0
    %832 = vmatprep.subr.mxu0 0.0
    %833 = vmatpush1.msra.mxu0 0.0
    %834 = vmatprep.subr.mxu0 0.0
    %835 = vmatpush1.msra.mxu0 0.0
    %836 = vmatprep.subr.mxu0 0.0
    %837 = vmatpush1.msra.mxu0 0.0
    %838 = vmatprep.subr.mxu0 0.0
    %839 = vmatpush1.msra.mxu0 0.0
    %840 = vmatprep.subr.mxu0 0.0
    %841 = vmatpush1.msra.mxu0 0.0
    %842 = vmatprep.subr.mxu0 0.0
    %843 = vmatpush1.msra.mxu0 0.0
    %844 = vmatprep.subr.mxu0 0.0
    %845 = vmatpush1.msra.mxu0 0.0
    %846 = vmatprep.subr.mxu0 0.0
    %847 = vmatpush1.msra.mxu0 0.0
    %848 = vmatprep.subr.mxu0 0.0
    %849 = vmatpush1.msra.mxu0 0.0
    %850 = vmatprep.mubr.f32.mxu0 0.0
    %851 = vmatmul.mubr.f32.gmra.mrb[0].mxu0 %v784
    %v852 = vpop.f32.mrb[0].mxu0
    %v853 = vadd.f32 0.0, %v852
    %v854 = vpop.f32.mrb[0].mxu0
    %855 = vdwg.mxu0
    %v856 = vadd.f32 %v779, %v853
    %v857 = vadd.f32 %v856, %v184
    %v858 = vrot.slane %v164, 6
    %v860 = vadd.f32 %v777, %v858
    %v861 = vxor.u32 %v860, 2147483648
    %v862 = vmul.f32 %v861, 1.442695
    %v863 = vpow.pop %v862
    %v864 = vadd.f32 %v863, 1.0
    %v865 = vrcp.pop %v864
    %v866 = vmul.f32 1.0, %v865
    %v867 = vtanh.pop %v860
    %v868 = vmul.f32 %v866, %v674
    %870 = vrot.lane.b32.xlu0 %v867, 64
    %v871 = vpop.permute.xlu0 %870
    %v873 = vmul.f32 %v866, %v871
    %875 = vrot.lane.b32.xlu0 %v873, 32
    %v876 = vpop.permute.xlu0 %875
    %v878 = vadd.f32 %v868, %v876
    %v879 = vtanh.pop %v878
    %881 = vrot.lane.b32.xlu0 %v879, 64
    %v882 = vpop.permute.xlu0 %881
    %v884 = vmul.f32 %v866, %v882
    %v885 = vxor.u32 %v857, 2147483648
    %v886 = vmul.f32 %v885, 1.442695
    %v887 = vpow.pop %v886
    %v888 = vadd.f32 %v887, 1.0
    %v889 = vrcp.pop %v888
    %v890 = vmul.f32 1.0, %v889
    %v891 = vtanh.pop %v857
    %v892 = vmul.f32 %v890, %v698
    %894 = vrot.lane.b32.xlu0 %v891, 64
    %v895 = vpop.permute.xlu0 %894
    %v897 = vmul.f32 %v890, %v895
    %899 = vrot.lane.b32.xlu0 %v897, 32
    %v900 = vpop.permute.xlu0 %899
    %v902 = vadd.f32 %v892, %v900
    %v903 = vtanh.pop %v902
    %905 = vrot.lane.b32.xlu0 %v903, 64
    %v906 = vpop.permute.xlu0 %905
    %v908 = vmul.f32 %v890, %v906
    %910 = vrot.lane.b32.xlu0 %v884, 32
    %v911 = vpop.permute.xlu0 %910
    %v912 = vsel %vm191, %v911, 0
    %914 = vmatprep.subr.mxu0 %v173
    %915 = vmatpush1.msra.mxu0 %v172
    %916 = vmatprep.subr.mxu0 %v175
    %917 = vmatpush1.msra.mxu0 %v174
    %918 = vmatprep.subr.mxu0 %v177
    %919 = vmatpush1.msra.mxu0 %v176
    %920 = vmatprep.subr.mxu0 %v179
    %921 = vmatpush1.msra.mxu0 %v178
    %922 = vmatprep.subr.mxu0 0.0
    %923 = vmatpush1.msra.mxu0 0.0
    %924 = vmatprep.subr.mxu0 0.0
    %925 = vmatpush1.msra.mxu0 0.0
    %926 = vmatprep.subr.mxu0 0.0
    %927 = vmatpush1.msra.mxu0 0.0
    %928 = vmatprep.subr.mxu0 0.0
    %929 = vmatpush1.msra.mxu0 0.0
    %930 = vmatprep.subr.mxu0 0.0
    %931 = vmatpush1.msra.mxu0 0.0
    %932 = vmatprep.subr.mxu0 0.0
    %933 = vmatpush1.msra.mxu0 0.0
    %934 = vmatprep.subr.mxu0 0.0
    %935 = vmatpush1.msra.mxu0 0.0
    %936 = vmatprep.subr.mxu0 0.0
    %937 = vmatpush1.msra.mxu0 0.0
    %938 = vmatprep.subr.mxu0 0.0
    %939 = vmatpush1.msra.mxu0 0.0
    %940 = vmatprep.subr.mxu0 0.0
    %941 = vmatpush1.msra.mxu0 0.0
    %942 = vmatprep.subr.mxu0 0.0
    %943 = vmatpush1.msra.mxu0 0.0
    %944 = vmatprep.subr.mxu0 0.0
    %945 = vmatpush1.msra.mxu0 0.0
    %946 = vmatprep.subr.mxu0 0.0
    %947 = vmatpush1.msra.mxu0 0.0
    %948 = vmatprep.subr.mxu0 0.0
    %949 = vmatpush1.msra.mxu0 0.0
    %950 = vmatprep.subr.mxu0 0.0
    %951 = vmatpush1.msra.mxu0 0.0
    %952 = vmatprep.subr.mxu0 0.0
    %953 = vmatpush1.msra.mxu0 0.0
    %954 = vmatprep.subr.mxu0 0.0
    %955 = vmatpush1.msra.mxu0 0.0
    %956 = vmatprep.subr.mxu0 0.0
    %957 = vmatpush1.msra.mxu0 0.0
    %958 = vmatprep.subr.mxu0 0.0
    %959 = vmatpush1.msra.mxu0 0.0
    %960 = vmatprep.subr.mxu0 0.0
    %961 = vmatpush1.msra.mxu0 0.0
    %962 = vmatprep.subr.mxu0 0.0
    %963 = vmatpush1.msra.mxu0 0.0
    %964 = vmatprep.subr.mxu0 0.0
    %965 = vmatpush1.msra.mxu0 0.0
    %966 = vmatprep.subr.mxu0 0.0
    %967 = vmatpush1.msra.mxu0 0.0
    %968 = vmatprep.subr.mxu0 0.0
    %969 = vmatpush1.msra.mxu0 0.0
    %970 = vmatprep.subr.mxu0 0.0
    %971 = vmatpush1.msra.mxu0 0.0
    %972 = vmatprep.subr.mxu0 0.0
    %973 = vmatpush1.msra.mxu0 0.0
    %974 = vmatprep.subr.mxu0 0.0
    %975 = vmatpush1.msra.mxu0 0.0
    %976 = vmatprep.subr.mxu0 0.0
    %977 = vmatpush1.msra.mxu0 0.0
    %978 = vmatprep.mubr.f32.mxu0 0.0
    %979 = vmatmul.mubr.f32.gmra.mrb[0].mxu0 %v912
    %v980 = vpop.f32.mrb[0].mxu0
    %v981 = vadd.f32 0.0, %v980
    %v982 = vpop.f32.mrb[0].mxu0
    %v983 = vadd.f32 0.0, %v982
    %984 = vdwg.mxu0
    %986 = vrot.lane.b32.xlu0 %v908, 32
    %v987 = vpop.permute.xlu0 %986
    %v988 = vsel %vm191, %v987, 0
    %990 = vmatprep.subr.mxu0 0.0
    %991 = vmatpush1.msra.mxu0 %v180
    %992 = vmatprep.subr.mxu0 0.0
    %993 = vmatpush1.msra.mxu0 %v181
    %994 = vmatprep.subr.mxu0 0.0
    %995 = vmatpush1.msra.mxu0 %v182
    %996 = vmatprep.subr.mxu0 0.0
    %997 = vmatpush1.msra.mxu0 %v183
    %998 = vmatprep.subr.mxu0 0.0
    %999 = vmatpush1.msra.mxu0 0.0
    %1000 = vmatprep.subr.mxu0 0.0
    %1001 = vmatpush1.msra.mxu0 0.0
    %1002 = vmatprep.subr.mxu0 0.0
    %1003 = vmatpush1.msra.mxu0 0.0
    %1004 = vmatprep.subr.mxu0 0.0
    %1005 = vmatpush1.msra.mxu0 0.0
    %1006 = vmatprep.subr.mxu0 0.0
    %1007 = vmatpush1.msra.mxu0 0.0
    %1008 = vmatprep.subr.mxu0 0.0
    %1009 = vmatpush1.msra.mxu0 0.0
    %1010 = vmatprep.subr.mxu0 0.0
    %1011 = vmatpush1.msra.mxu0 0.0
    %1012 = vmatprep.subr.mxu0 0.0
    %1013 = vmatpush1.msra.mxu0 0.0
    %1014 = vmatprep.subr.mxu0 0.0
    %1015 = vmatpush1.msra.mxu0 0.0
    %1016 = vmatprep.subr.mxu0 0.0
    %1017 = vmatpush1.msra.mxu0 0.0
    %1018 = vmatprep.subr.mxu0 0.0
    %1019 = vmatpush1.msra.mxu0 0.0
    %1020 = vmatprep.subr.mxu0 0.0
    %1021 = vmatpush1.msra.mxu0 0.0
    %1022 = vmatprep.subr.mxu0 0.0
    %1023 = vmatpush1.msra.mxu0 0.0
    %1024 = vmatprep.subr.mxu0 0.0
    %1025 = vmatpush1.msra.mxu0 0.0
    %1026 = vmatprep.subr.mxu0 0.0
    %1027 = vmatpush1.msra.mxu0 0.0
    %1028 = vmatprep.subr.mxu0 0.0
    %1029 = vmatpush1.msra.mxu0 0.0
    %1030 = vmatprep.subr.mxu0 0.0
    %1031 = vmatpush1.msra.mxu0 0.0
    %1032 = vmatprep.subr.mxu0 0.0
    %1033 = vmatpush1.msra.mxu0 0.0
    %1034 = vmatprep.subr.mxu0 0.0
    %1035 = vmatpush1.msra.mxu0 0.0
    %1036 = vmatprep.subr.mxu0 0.0
    %1037 = vmatpush1.msra.mxu0 0.0
    %1038 = vmatprep.subr.mxu0 0.0
    %1039 = vmatpush1.msra.mxu0 0.0
    %1040 = vmatprep.subr.mxu0 0.0
    %1041 = vmatpush1.msra.mxu0 0.0
    %1042 = vmatprep.subr.mxu0 0.0
    %1043 = vmatpush1.msra.mxu0 0.0
    %1044 = vmatprep.subr.mxu0 0.0
    %1045 = vmatpush1.msra.mxu0 0.0
    %1046 = vmatprep.subr.mxu0 0.0
    %1047 = vmatpush1.msra.mxu0 0.0
    %1048 = vmatprep.subr.mxu0 0.0
    %1049 = vmatpush1.msra.mxu0 0.0
    %1050 = vmatprep.subr.mxu0 0.0
    %1051 = vmatpush1.msra.mxu0 0.0
    %1052 = vmatprep.subr.mxu0 0.0
    %1053 = vmatpush1.msra.mxu0 0.0
    %1054 = vmatprep.mubr.f32.mxu0 0.0
    %1055 = vmatmul.mubr.f32.gmra.mrb[0].mxu0 %v988
    %v1056 = vpop.f32.mrb[0].mxu0
    %v1057 = vadd.f32 0.0, %v1056
    %v1058 = vpop.f32.mrb[0].mxu0
    %1059 = vdwg.mxu0
    %v1060 = vadd.f32 %v983, %v1057
    %v1061 = vadd.f32 %v1060, %v184
    %v1062 = vadd.f32 %v981, %v169
    %v1063 = vxor.u32 %v1062, 2147483648
    %v1064 = vmul.f32 %v1063, 1.442695
    %v1065 = vpow.pop %v1064
    %v1066 = vadd.f32 %v1065, 1.0
    %v1067 = vrcp.pop %v1066
    %v1068 = vmul.f32 1.0, %v1067
    %v1069 = vtanh.pop %v1062
    %v1070 = vmul.f32 %v1068, %v878
    %1072 = vrot.lane.b32.xlu0 %v1069, 64
    %v1073 = vpop.permute.xlu0 %1072
    %v1075 = vmul.f32 %v1068, %v1073
    %1077 = vrot.lane.b32.xlu0 %v1075, 32
    %v1078 = vpop.permute.xlu0 %1077
    %v1080 = vadd.f32 %v1070, %v1078
    %v1081 = vtanh.pop %v1080
    %1083 = vrot.lane.b32.xlu0 %v1081, 64
    %v1084 = vpop.permute.xlu0 %1083
    %v1086 = vmul.f32 %v1068, %v1084
    %v1087 = vxor.u32 %v1061, 2147483648
    %v1088 = vmul.f32 %v1087, 1.442695
    %v1089 = vpow.pop %v1088
    %v1090 = vadd.f32 %v1089, 1.0
    %v1091 = vrcp.pop %v1090
    %v1092 = vmul.f32 1.0, %v1091
    %v1093 = vtanh.pop %v1061
    %v1094 = vmul.f32 %v1092, %v902
    %1096 = vrot.lane.b32.xlu0 %v1093, 64
    %v1097 = vpop.permute.xlu0 %1096
    %v1099 = vmul.f32 %v1092, %v1097
    %1101 = vrot.lane.b32.xlu0 %v1099, 32
    %v1102 = vpop.permute.xlu0 %1101
    %v1104 = vadd.f32 %v1094, %v1102
    %v1105 = vtanh.pop %v1104
    %1107 = vrot.lane.b32.xlu0 %v1105, 64
    %v1108 = vpop.permute.xlu0 %1107
    %v1110 = vmul.f32 %v1092, %v1108
    %1112 = vrot.lane.b32.xlu0 %v1086, 32
    %v1113 = vpop.permute.xlu0 %1112
    %v1114 = vsel %vm191, %v1113, 0
    %1116 = vmatprep.subr.mxu0 %v173
    %1117 = vmatpush1.msra.mxu0 %v172
    %1118 = vmatprep.subr.mxu0 %v175
    %1119 = vmatpush1.msra.mxu0 %v174
    %1120 = vmatprep.subr.mxu0 %v177
    %1121 = vmatpush1.msra.mxu0 %v176
    %1122 = vmatprep.subr.mxu0 %v179
    %1123 = vmatpush1.msra.mxu0 %v178
    %1124 = vmatprep.subr.mxu0 0.0
    %1125 = vmatpush1.msra.mxu0 0.0
    %1126 = vmatprep.subr.mxu0 0.0
    %1127 = vmatpush1.msra.mxu0 0.0
    %1128 = vmatprep.subr.mxu0 0.0
    %1129 = vmatpush1.msra.mxu0 0.0
    %1130 = vmatprep.subr.mxu0 0.0
    %1131 = vmatpush1.msra.mxu0 0.0
    %1132 = vmatprep.subr.mxu0 0.0
    %1133 = vmatpush1.msra.mxu0 0.0
    %1134 = vmatprep.subr.mxu0 0.0
    %1135 = vmatpush1.msra.mxu0 0.0
    %1136 = vmatprep.subr.mxu0 0.0
    %1137 = vmatpush1.msra.mxu0 0.0
    %1138 = vmatprep.subr.mxu0 0.0
    %1139 = vmatpush1.msra.mxu0 0.0
    %1140 = vmatprep.subr.mxu0 0.0
    %1141 = vmatpush1.msra.mxu0 0.0
    %1142 = vmatprep.subr.mxu0 0.0
    %1143 = vmatpush1.msra.mxu0 0.0
    %1144 = vmatprep.subr.mxu0 0.0
    %1145 = vmatpush1.msra.mxu0 0.0
    %1146 = vmatprep.subr.mxu0 0.0
    %1147 = vmatpush1.msra.mxu0 0.0
    %1148 = vmatprep.subr.mxu0 0.0
    %1149 = vmatpush1.msra.mxu0 0.0
    %1150 = vmatprep.subr.mxu0 0.0
    %1151 = vmatpush1.msra.mxu0 0.0
    %1152 = vmatprep.subr.mxu0 0.0
    %1153 = vmatpush1.msra.mxu0 0.0
    %1154 = vmatprep.subr.mxu0 0.0
    %1155 = vmatpush1.msra.mxu0 0.0
    %1156 = vmatprep.subr.mxu0 0.0
    %1157 = vmatpush1.msra.mxu0 0.0
    %1158 = vmatprep.subr.mxu0 0.0
    %1159 = vmatpush1.msra.mxu0 0.0
    %1160 = vmatprep.subr.mxu0 0.0
    %1161 = vmatpush1.msra.mxu0 0.0
    %1162 = vmatprep.subr.mxu0 0.0
    %1163 = vmatpush1.msra.mxu0 0.0
    %1164 = vmatprep.subr.mxu0 0.0
    %1165 = vmatpush1.msra.mxu0 0.0
    %1166 = vmatprep.subr.mxu0 0.0
    %1167 = vmatpush1.msra.mxu0 0.0
    %1168 = vmatprep.subr.mxu0 0.0
    %1169 = vmatpush1.msra.mxu0 0.0
    %1170 = vmatprep.subr.mxu0 0.0
    %1171 = vmatpush1.msra.mxu0 0.0
    %1172 = vmatprep.subr.mxu0 0.0
    %1173 = vmatpush1.msra.mxu0 0.0
    %1174 = vmatprep.subr.mxu0 0.0
    %1175 = vmatpush1.msra.mxu0 0.0
    %1176 = vmatprep.subr.mxu0 0.0
    %1177 = vmatpush1.msra.mxu0 0.0
    %1178 = vmatprep.subr.mxu0 0.0
    %1179 = vmatpush1.msra.mxu0 0.0
    %1180 = vmatprep.mubr.f32.mxu0 0.0
    %1181 = vmatmul.mubr.f32.gmra.mrb[0].mxu0 %v1114
    %v1182 = vpop.f32.mrb[0].mxu0
    %v1183 = vadd.f32 0.0, %v1182
    %v1184 = vpop.f32.mrb[0].mxu0
    %v1185 = vadd.f32 0.0, %v1184
    %1186 = vdwg.mxu0
    %1188 = vrot.lane.b32.xlu0 %v1110, 32
    %v1189 = vpop.permute.xlu0 %1188
    %v1190 = vsel %vm191, %v1189, 0
    %1192 = vmatprep.subr.mxu0 0.0
    %1193 = vmatpush1.msra.mxu0 %v180
    %1194 = vmatprep.subr.mxu0 0.0
    %1195 = vmatpush1.msra.mxu0 %v181
    %1196 = vmatprep.subr.mxu0 0.0
    %1197 = vmatpush1.msra.mxu0 %v182
    %1198 = vmatprep.subr.mxu0 0.0
    %1199 = vmatpush1.msra.mxu0 %v183
    %1200 = vmatprep.subr.mxu0 0.0
    %1201 = vmatpush1.msra.mxu0 0.0
    %1202 = vmatprep.subr.mxu0 0.0
    %1203 = vmatpush1.msra.mxu0 0.0
    %1204 = vmatprep.subr.mxu0 0.0
    %1205 = vmatpush1.msra.mxu0 0.0
    %1206 = vmatprep.subr.mxu0 0.0
    %1207 = vmatpush1.msra.mxu0 0.0
    %1208 = vmatprep.subr.mxu0 0.0
    %1209 = vmatpush1.msra.mxu0 0.0
    %1210 = vmatprep.subr.mxu0 0.0
    %1211 = vmatpush1.msra.mxu0 0.0
    %1212 = vmatprep.subr.mxu0 0.0
    %1213 = vmatpush1.msra.mxu0 0.0
    %1214 = vmatprep.subr.mxu0 0.0
    %1215 = vmatpush1.msra.mxu0 0.0
    %1216 = vmatprep.subr.mxu0 0.0
    %1217 = vmatpush1.msra.mxu0 0.0
    %1218 = vmatprep.subr.mxu0 0.0
    %1219 = vmatpush1.msra.mxu0 0.0
    %1220 = vmatprep.subr.mxu0 0.0
    %1221 = vmatpush1.msra.mxu0 0.0
    %1222 = vmatprep.subr.mxu0 0.0
    %1223 = vmatpush1.msra.mxu0 0.0
    %1224 = vmatprep.subr.mxu0 0.0
    %1225 = vmatpush1.msra.mxu0 0.0
    %1226 = vmatprep.subr.mxu0 0.0
    %1227 = vmatpush1.msra.mxu0 0.0
    %1228 = vmatprep.subr.mxu0 0.0
    %1229 = vmatpush1.msra.mxu0 0.0
    %1230 = vmatprep.subr.mxu0 0.0
    %1231 = vmatpush1.msra.mxu0 0.0
    %1232 = vmatprep.subr.mxu0 0.0
    %1233 = vmatpush1.msra.mxu0 0.0
    %1234 = vmatprep.subr.mxu0 0.0
    %1235 = vmatpush1.msra.mxu0 0.0
    %1236 = vmatprep.subr.mxu0 0.0
    %1237 = vmatpush1.msra.mxu0 0.0
    %1238 = vmatprep.subr.mxu0 0.0
    %1239 = vmatpush1.msra.mxu0 0.0
    %1240 = vmatprep.subr.mxu0 0.0
    %1241 = vmatpush1.msra.mxu0 0.0
    %1242 = vmatprep.subr.mxu0 0.0
    %1243 = vmatpush1.msra.mxu0 0.0
    %1244 = vmatprep.subr.mxu0 0.0
    %1245 = vmatpush1.msra.mxu0 0.0
    %1246 = vmatprep.subr.mxu0 0.0
    %1247 = vmatpush1.msra.mxu0 0.0
    %1248 = vmatprep.subr.mxu0 0.0
    %1249 = vmatpush1.msra.mxu0 0.0
    %1250 = vmatprep.subr.mxu0 0.0
    %1251 = vmatpush1.msra.mxu0 0.0
    %1252 = vmatprep.subr.mxu0 0.0
    %1253 = vmatpush1.msra.mxu0 0.0
    %1254 = vmatprep.subr.mxu0 0.0
    %1255 = vmatpush1.msra.mxu0 0.0
    %1256 = vmatprep.mubr.f32.mxu0 0.0
    %1257 = vmatmul.mubr.f32.gmra.mrb[0].mxu0 %v1190
    %v1258 = vpop.f32.mrb[0].mxu0
    %v1259 = vadd.f32 0.0, %v1258
    %v1260 = vpop.f32.mrb[0].mxu0
    %1261 = vdwg.mxu0
    %v1262 = vadd.f32 %v1185, %v1259
    %v1263 = vadd.f32 %v1262, %v184
    %v1265 = vrot.slane %v169, 2
    %v1267 = vadd.f32 %v1183, %v1265
    %v1268 = vxor.u32 %v1267, 2147483648
    %v1269 = vmul.f32 %v1268, 1.442695
    %v1270 = vpow.pop %v1269
    %v1271 = vadd.f32 %v1270, 1.0
    %v1272 = vrcp.pop %v1271
    %v1273 = vmul.f32 1.0, %v1272
    %v1274 = vtanh.pop %v1267
    %v1275 = vmul.f32 %v1273, %v1080
    %1277 = vrot.lane.b32.xlu0 %v1274, 64
    %v1278 = vpop.permute.xlu0 %1277
    %v1280 = vmul.f32 %v1273, %v1278
    %1282 = vrot.lane.b32.xlu0 %v1280, 32
    %v1283 = vpop.permute.xlu0 %1282
    %v1285 = vadd.f32 %v1275, %v1283
    %v1286 = vtanh.pop %v1285
    %1288 = vrot.lane.b32.xlu0 %v1286, 64
    %v1289 = vpop.permute.xlu0 %1288
    %v1291 = vmul.f32 %v1273, %v1289
    %v1292 = vxor.u32 %v1263, 2147483648
    %v1293 = vmul.f32 %v1292, 1.442695
    %v1294 = vpow.pop %v1293
    %v1295 = vadd.f32 %v1294, 1.0
    %v1296 = vrcp.pop %v1295
    %v1297 = vmul.f32 1.0, %v1296
    %v1298 = vtanh.pop %v1263
    %v1299 = vmul.f32 %v1297, %v1104
    %1301 = vrot.lane.b32.xlu0 %v1298, 64
    %v1302 = vpop.permute.xlu0 %1301
    %v1304 = vmul.f32 %v1297, %v1302
    %1306 = vrot.lane.b32.xlu0 %v1304, 32
    %v1307 = vpop.permute.xlu0 %1306
    %v1309 = vadd.f32 %v1299, %v1307
    %v1310 = vtanh.pop %v1309
    %1312 = vrot.lane.b32.xlu0 %v1310, 64
    %v1313 = vpop.permute.xlu0 %1312
    %v1315 = vmul.f32 %v1297, %v1313
    %1317 = vrot.lane.b32.xlu0 %v1291, 32
    %v1318 = vpop.permute.xlu0 %1317
    %v1319 = vsel %vm191, %v1318, 0
    %1321 = vmatprep.subr.mxu0 %v173
    %1322 = vmatpush1.msra.mxu0 %v172
    %1323 = vmatprep.subr.mxu0 %v175
    %1324 = vmatpush1.msra.mxu0 %v174
    %1325 = vmatprep.subr.mxu0 %v177
    %1326 = vmatpush1.msra.mxu0 %v176
    %1327 = vmatprep.subr.mxu0 %v179
    %1328 = vmatpush1.msra.mxu0 %v178
    %1329 = vmatprep.subr.mxu0 0.0
    %1330 = vmatpush1.msra.mxu0 0.0
    %1331 = vmatprep.subr.mxu0 0.0
    %1332 = vmatpush1.msra.mxu0 0.0
    %1333 = vmatprep.subr.mxu0 0.0
    %1334 = vmatpush1.msra.mxu0 0.0
    %1335 = vmatprep.subr.mxu0 0.0
    %1336 = vmatpush1.msra.mxu0 0.0
    %1337 = vmatprep.subr.mxu0 0.0
    %1338 = vmatpush1.msra.mxu0 0.0
    %1339 = vmatprep.subr.mxu0 0.0
    %1340 = vmatpush1.msra.mxu0 0.0
    %1341 = vmatprep.subr.mxu0 0.0
    %1342 = vmatpush1.msra.mxu0 0.0
    %1343 = vmatprep.subr.mxu0 0.0
    %1344 = vmatpush1.msra.mxu0 0.0
    %1345 = vmatprep.subr.mxu0 0.0
    %1346 = vmatpush1.msra.mxu0 0.0
    %1347 = vmatprep.subr.mxu0 0.0
    %1348 = vmatpush1.msra.mxu0 0.0
    %1349 = vmatprep.subr.mxu0 0.0
    %1350 = vmatpush1.msra.mxu0 0.0
    %1351 = vmatprep.subr.mxu0 0.0
    %1352 = vmatpush1.msra.mxu0 0.0
    %1353 = vmatprep.subr.mxu0 0.0
    %1354 = vmatpush1.msra.mxu0 0.0
    %1355 = vmatprep.subr.mxu0 0.0
    %1356 = vmatpush1.msra.mxu0 0.0
    %1357 = vmatprep.subr.mxu0 0.0
    %1358 = vmatpush1.msra.mxu0 0.0
    %1359 = vmatprep.subr.mxu0 0.0
    %1360 = vmatpush1.msra.mxu0 0.0
    %1361 = vmatprep.subr.mxu0 0.0
    %1362 = vmatpush1.msra.mxu0 0.0
    %1363 = vmatprep.subr.mxu0 0.0
    %1364 = vmatpush1.msra.mxu0 0.0
    %1365 = vmatprep.subr.mxu0 0.0
    %1366 = vmatpush1.msra.mxu0 0.0
    %1367 = vmatprep.subr.mxu0 0.0
    %1368 = vmatpush1.msra.mxu0 0.0
    %1369 = vmatprep.subr.mxu0 0.0
    %1370 = vmatpush1.msra.mxu0 0.0
    %1371 = vmatprep.subr.mxu0 0.0
    %1372 = vmatpush1.msra.mxu0 0.0
    %1373 = vmatprep.subr.mxu0 0.0
    %1374 = vmatpush1.msra.mxu0 0.0
    %1375 = vmatprep.subr.mxu0 0.0
    %1376 = vmatpush1.msra.mxu0 0.0
    %1377 = vmatprep.subr.mxu0 0.0
    %1378 = vmatpush1.msra.mxu0 0.0
    %1379 = vmatprep.subr.mxu0 0.0
    %1380 = vmatpush1.msra.mxu0 0.0
    %1381 = vmatprep.subr.mxu0 0.0
    %1382 = vmatpush1.msra.mxu0 0.0
    %1383 = vmatprep.subr.mxu0 0.0
    %1384 = vmatpush1.msra.mxu0 0.0
    %1385 = vmatprep.mubr.f32.mxu0 0.0
    %1386 = vmatmul.mubr.f32.gmra.mrb[0].mxu0 %v1319
    %v1387 = vpop.f32.mrb[0].mxu0
    %v1388 = vadd.f32 0.0, %v1387
    %v1389 = vpop.f32.mrb[0].mxu0
    %v1390 = vadd.f32 0.0, %v1389
    %1391 = vdwg.mxu0
    %1393 = vrot.lane.b32.xlu0 %v1315, 32
    %v1394 = vpop.permute.xlu0 %1393
    %v1395 = vsel %vm191, %v1394, 0
    %1397 = vmatprep.subr.mxu0 0.0
    %1398 = vmatpush1.msra.mxu0 %v180
    %1399 = vmatprep.subr.mxu0 0.0
    %1400 = vmatpush1.msra.mxu0 %v181
    %1401 = vmatprep.subr.mxu0 0.0
    %1402 = vmatpush1.msra.mxu0 %v182
    %1403 = vmatprep.subr.mxu0 0.0
    %1404 = vmatpush1.msra.mxu0 %v183
    %1405 = vmatprep.subr.mxu0 0.0
    %1406 = vmatpush1.msra.mxu0 0.0
    %1407 = vmatprep.subr.mxu0 0.0
    %1408 = vmatpush1.msra.mxu0 0.0
    %1409 = vmatprep.subr.mxu0 0.0
    %1410 = vmatpush1.msra.mxu0 0.0
    %1411 = vmatprep.subr.mxu0 0.0
    %1412 = vmatpush1.msra.mxu0 0.0
    %1413 = vmatprep.subr.mxu0 0.0
    %1414 = vmatpush1.msra.mxu0 0.0
    %1415 = vmatprep.subr.mxu0 0.0
    %1416 = vmatpush1.msra.mxu0 0.0
    %1417 = vmatprep.subr.mxu0 0.0
    %1418 = vmatpush1.msra.mxu0 0.0
    %1419 = vmatprep.subr.mxu0 0.0
    %1420 = vmatpush1.msra.mxu0 0.0
    %1421 = vmatprep.subr.mxu0 0.0
    %1422 = vmatpush1.msra.mxu0 0.0
    %1423 = vmatprep.subr.mxu0 0.0
    %1424 = vmatpush1.msra.mxu0 0.0
    %1425 = vmatprep.subr.mxu0 0.0
    %1426 = vmatpush1.msra.mxu0 0.0
    %1427 = vmatprep.subr.mxu0 0.0
    %1428 = vmatpush1.msra.mxu0 0.0
    %1429 = vmatprep.subr.mxu0 0.0
    %1430 = vmatpush1.msra.mxu0 0.0
    %1431 = vmatprep.subr.mxu0 0.0
    %1432 = vmatpush1.msra.mxu0 0.0
    %1433 = vmatprep.subr.mxu0 0.0
    %1434 = vmatpush1.msra.mxu0 0.0
    %1435 = vmatprep.subr.mxu0 0.0
    %1436 = vmatpush1.msra.mxu0 0.0
    %1437 = vmatprep.subr.mxu0 0.0
    %1438 = vmatpush1.msra.mxu0 0.0
    %1439 = vmatprep.subr.mxu0 0.0
    %1440 = vmatpush1.msra.mxu0 0.0
    %1441 = vmatprep.subr.mxu0 0.0
    %1442 = vmatpush1.msra.mxu0 0.0
    %1443 = vmatprep.subr.mxu0 0.0
    %1444 = vmatpush1.msra.mxu0 0.0
    %1445 = vmatprep.subr.mxu0 0.0
    %1446 = vmatpush1.msra.mxu0 0.0
    %1447 = vmatprep.subr.mxu0 0.0
    %1448 = vmatpush1.msra.mxu0 0.0
    %1449 = vmatprep.subr.mxu0 0.0
    %1450 = vmatpush1.msra.mxu0 0.0
    %1451 = vmatprep.subr.mxu0 0.0
    %1452 = vmatpush1.msra.mxu0 0.0
    %1453 = vmatprep.subr.mxu0 0.0
    %1454 = vmatpush1.msra.mxu0 0.0
    %1455 = vmatprep.subr.mxu0 0.0
    %1456 = vmatpush1.msra.mxu0 0.0
    %1457 = vmatprep.subr.mxu0 0.0
    %1458 = vmatpush1.msra.mxu0 0.0
    %1459 = vmatprep.subr.mxu0 0.0
    %1460 = vmatpush1.msra.mxu0 0.0
    %1461 = vmatprep.mubr.f32.mxu0 0.0
    %1462 = vmatmul.mubr.f32.gmra.mrb[0].mxu0 %v1395
    %v1463 = vpop.f32.mrb[0].mxu0
    %v1464 = vadd.f32 0.0, %v1463
    %v1465 = vpop.f32.mrb[0].mxu0
    %1466 = vdwg.mxu0
    %v1467 = vadd.f32 %v1390, %v1464
    %v1468 = vadd.f32 %v1467, %v184
    %v1469 = vrot.slane %v169, 4
    %v1471 = vadd.f32 %v1388, %v1469
    %v1472 = vxor.u32 %v1471, 2147483648
    %v1473 = vmul.f32 %v1472, 1.442695
    %v1474 = vpow.pop %v1473
    %v1475 = vadd.f32 %v1474, 1.0
    %v1476 = vrcp.pop %v1475
    %v1477 = vmul.f32 1.0, %v1476
    %v1478 = vtanh.pop %v1471
    %v1479 = vmul.f32 %v1477, %v1285
    %1481 = vrot.lane.b32.xlu0 %v1478, 64
    %v1482 = vpop.permute.xlu0 %1481
    %v1484 = vmul.f32 %v1477, %v1482
    %1486 = vrot.lane.b32.xlu0 %v1484, 32
    %v1487 = vpop.permute.xlu0 %1486
    %v1489 = vadd.f32 %v1479, %v1487
    %v1490 = vtanh.pop %v1489
    %1492 = vrot.lane.b32.xlu0 %v1490, 64
    %v1493 = vpop.permute.xlu0 %1492
    %v1495 = vmul.f32 %v1477, %v1493
    %v1496 = vxor.u32 %v1468, 2147483648
    %v1497 = vmul.f32 %v1496, 1.442695
    %v1498 = vpow.pop %v1497
    %v1499 = vadd.f32 %v1498, 1.0
    %v1500 = vrcp.pop %v1499
    %v1501 = vmul.f32 1.0, %v1500
    %v1502 = vtanh.pop %v1468
    %v1503 = vmul.f32 %v1501, %v1309
    %1505 = vrot.lane.b32.xlu0 %v1502, 64
    %v1506 = vpop.permute.xlu0 %1505
    %v1508 = vmul.f32 %v1501, %v1506
    %1510 = vrot.lane.b32.xlu0 %v1508, 32
    %v1511 = vpop.permute.xlu0 %1510
    %v1513 = vadd.f32 %v1503, %v1511
    %v1514 = vtanh.pop %v1513
    %1516 = vrot.lane.b32.xlu0 %v1514, 64
    %v1517 = vpop.permute.xlu0 %1516
    %v1519 = vmul.f32 %v1501, %v1517
    %1521 = vrot.lane.b32.xlu0 %v1495, 32
    %v1522 = vpop.permute.xlu0 %1521
    %v1523 = vsel %vm191, %v1522, 0
    %1525 = vmatprep.subr.mxu0 %v173
    %1526 = vmatpush1.msra.mxu0 %v172
    %1527 = vmatprep.subr.mxu0 %v175
    %1528 = vmatpush1.msra.mxu0 %v174
    %1529 = vmatprep.subr.mxu0 %v177
    %1530 = vmatpush1.msra.mxu0 %v176
    %1531 = vmatprep.subr.mxu0 %v179
    %1532 = vmatpush1.msra.mxu0 %v178
    %1533 = vmatprep.subr.mxu0 0.0
    %1534 = vmatpush1.msra.mxu0 0.0
    %1535 = vmatprep.subr.mxu0 0.0
    %1536 = vmatpush1.msra.mxu0 0.0
    %1537 = vmatprep.subr.mxu0 0.0
    %1538 = vmatpush1.msra.mxu0 0.0
    %1539 = vmatprep.subr.mxu0 0.0
    %1540 = vmatpush1.msra.mxu0 0.0
    %1541 = vmatprep.subr.mxu0 0.0
    %1542 = vmatpush1.msra.mxu0 0.0
    %1543 = vmatprep.subr.mxu0 0.0
    %1544 = vmatpush1.msra.mxu0 0.0
    %1545 = vmatprep.subr.mxu0 0.0
    %1546 = vmatpush1.msra.mxu0 0.0
    %1547 = vmatprep.subr.mxu0 0.0
    %1548 = vmatpush1.msra.mxu0 0.0
    %1549 = vmatprep.subr.mxu0 0.0
    %1550 = vmatpush1.msra.mxu0 0.0
    %1551 = vmatprep.subr.mxu0 0.0
    %1552 = vmatpush1.msra.mxu0 0.0
    %1553 = vmatprep.subr.mxu0 0.0
    %1554 = vmatpush1.msra.mxu0 0.0
    %1555 = vmatprep.subr.mxu0 0.0
    %1556 = vmatpush1.msra.mxu0 0.0
    %1557 = vmatprep.subr.mxu0 0.0
    %1558 = vmatpush1.msra.mxu0 0.0
    %1559 = vmatprep.subr.mxu0 0.0
    %1560 = vmatpush1.msra.mxu0 0.0
    %1561 = vmatprep.subr.mxu0 0.0
    %1562 = vmatpush1.msra.mxu0 0.0
    %1563 = vmatprep.subr.mxu0 0.0
    %1564 = vmatpush1.msra.mxu0 0.0
    %1565 = vmatprep.subr.mxu0 0.0
    %1566 = vmatpush1.msra.mxu0 0.0
    %1567 = vmatprep.subr.mxu0 0.0
    %1568 = vmatpush1.msra.mxu0 0.0
    %1569 = vmatprep.subr.mxu0 0.0
    %1570 = vmatpush1.msra.mxu0 0.0
    %1571 = vmatprep.subr.mxu0 0.0
    %1572 = vmatpush1.msra.mxu0 0.0
    %1573 = vmatprep.subr.mxu0 0.0
    %1574 = vmatpush1.msra.mxu0 0.0
    %1575 = vmatprep.subr.mxu0 0.0
    %1576 = vmatpush1.msra.mxu0 0.0
    %1577 = vmatprep.subr.mxu0 0.0
    %1578 = vmatpush1.msra.mxu0 0.0
    %1579 = vmatprep.subr.mxu0 0.0
    %1580 = vmatpush1.msra.mxu0 0.0
    %1581 = vmatprep.subr.mxu0 0.0
    %1582 = vmatpush1.msra.mxu0 0.0
    %1583 = vmatprep.subr.mxu0 0.0
    %1584 = vmatpush1.msra.mxu0 0.0
    %1585 = vmatprep.subr.mxu0 0.0
    %1586 = vmatpush1.msra.mxu0 0.0
    %1587 = vmatprep.subr.mxu0 0.0
    %1588 = vmatpush1.msra.mxu0 0.0
    %1589 = vmatprep.mubr.f32.mxu0 0.0
    %1590 = vmatmul.mubr.f32.gmra.mrb[0].mxu0 %v1523
    %v1591 = vpop.f32.mrb[0].mxu0
    %v1592 = vadd.f32 0.0, %v1591
    %v1593 = vpop.f32.mrb[0].mxu0
    %v1594 = vadd.f32 0.0, %v1593
    %1595 = vdwg.mxu0
    %1597 = vrot.lane.b32.xlu0 %v1519, 32
    %v1598 = vpop.permute.xlu0 %1597
    %v1599 = vsel %vm191, %v1598, 0
    %1601 = vmatprep.subr.mxu0 0.0
    %1602 = vmatpush1.msra.mxu0 %v180
    %1603 = vmatprep.subr.mxu0 0.0
    %1604 = vmatpush1.msra.mxu0 %v181
    %1605 = vmatprep.subr.mxu0 0.0
    %1606 = vmatpush1.msra.mxu0 %v182
    %1607 = vmatprep.subr.mxu0 0.0
    %1608 = vmatpush1.msra.mxu0 %v183
    %1609 = vmatprep.subr.mxu0 0.0
    %1610 = vmatpush1.msra.mxu0 0.0
    %1611 = vmatprep.subr.mxu0 0.0
    %1612 = vmatpush1.msra.mxu0 0.0
    %1613 = vmatprep.subr.mxu0 0.0
    %1614 = vmatpush1.msra.mxu0 0.0
    %1615 = vmatprep.subr.mxu0 0.0
    %1616 = vmatpush1.msra.mxu0 0.0
    %1617 = vmatprep.subr.mxu0 0.0
    %1618 = vmatpush1.msra.mxu0 0.0
    %1619 = vmatprep.subr.mxu0 0.0
    %1620 = vmatpush1.msra.mxu0 0.0
    %1621 = vmatprep.subr.mxu0 0.0
    %1622 = vmatpush1.msra.mxu0 0.0
    %1623 = vmatprep.subr.mxu0 0.0
    %1624 = vmatpush1.msra.mxu0 0.0
    %1625 = vmatprep.subr.mxu0 0.0
    %1626 = vmatpush1.msra.mxu0 0.0
    %1627 = vmatprep.subr.mxu0 0.0
    %1628 = vmatpush1.msra.mxu0 0.0
    %1629 = vmatprep.subr.mxu0 0.0
    %1630 = vmatpush1.msra.mxu0 0.0
    %1631 = vmatprep.subr.mxu0 0.0
    %1632 = vmatpush1.msra.mxu0 0.0
    %1633 = vmatprep.subr.mxu0 0.0
    %1634 = vmatpush1.msra.mxu0 0.0
    %1635 = vmatprep.subr.mxu0 0.0
    %1636 = vmatpush1.msra.mxu0 0.0
    %1637 = vmatprep.subr.mxu0 0.0
    %1638 = vmatpush1.msra.mxu0 0.0
    %1639 = vmatprep.subr.mxu0 0.0
    %1640 = vmatpush1.msra.mxu0 0.0
    %1641 = vmatprep.subr.mxu0 0.0
    %1642 = vmatpush1.msra.mxu0 0.0
    %1643 = vmatprep.subr.mxu0 0.0
    %1644 = vmatpush1.msra.mxu0 0.0
    %1645 = vmatprep.subr.mxu0 0.0
    %1646 = vmatpush1.msra.mxu0 0.0
    %1647 = vmatprep.subr.mxu0 0.0
    %1648 = vmatpush1.msra.mxu0 0.0
    %1649 = vmatprep.subr.mxu0 0.0
    %1650 = vmatpush1.msra.mxu0 0.0
    %1651 = vmatprep.subr.mxu0 0.0
    %1652 = vmatpush1.msra.mxu0 0.0
    %1653 = vmatprep.subr.mxu0 0.0
    %1654 = vmatpush1.msra.mxu0 0.0
    %1655 = vmatprep.subr.mxu0 0.0
    %1656 = vmatpush1.msra.mxu0 0.0
    %1657 = vmatprep.subr.mxu0 0.0
    %1658 = vmatpush1.msra.mxu0 0.0
    %1659 = vmatprep.subr.mxu0 0.0
    %1660 = vmatpush1.msra.mxu0 0.0
    %1661 = vmatprep.subr.mxu0 0.0
    %1662 = vmatpush1.msra.mxu0 0.0
    %1663 = vmatprep.subr.mxu0 0.0
    %1664 = vmatpush1.msra.mxu0 0.0
    %1665 = vmatprep.mubr.f32.mxu0 0.0
    %1666 = vmatmul.mubr.f32.gmra.mrb[0].mxu0 %v1599
    %v1667 = vpop.f32.mrb[0].mxu0
    %v1668 = vadd.f32 0.0, %v1667
    %v1669 = vpop.f32.mrb[0].mxu0
    %1670 = vdwg.mxu0
    %v1671 = vadd.f32 %v1594, %v1668
    %v1672 = vadd.f32 %v1671, %v184
    %v1673 = vrot.slane %v169, 6
    %v1675 = vadd.f32 %v1592, %v1673
    %v1676 = vxor.u32 %v1675, 2147483648
    %v1677 = vmul.f32 %v1676, 1.442695
    %v1678 = vpow.pop %v1677
    %v1679 = vadd.f32 %v1678, 1.0
    %v1680 = vrcp.pop %v1679
    %v1681 = vmul.f32 1.0, %v1680
    %v1682 = vtanh.pop %v1675
    %v1683 = vmul.f32 %v1681, %v1489
    %1685 = vrot.lane.b32.xlu0 %v1682, 64
    %v1686 = vpop.permute.xlu0 %1685
    %v1688 = vmul.f32 %v1681, %v1686
    %1690 = vrot.lane.b32.xlu0 %v1688, 32
    %v1691 = vpop.permute.xlu0 %1690
    %v1693 = vadd.f32 %v1683, %v1691
    %v1694 = vtanh.pop %v1693
    %1696 = vrot.lane.b32.xlu0 %v1694, 64
    %v1697 = vpop.permute.xlu0 %1696
    %v1699 = vmul.f32 %v1681, %v1697
    %v1700 = vxor.u32 %v1672, 2147483648
    %v1701 = vmul.f32 %v1700, 1.442695
    %v1702 = vpow.pop %v1701
    %v1703 = vadd.f32 %v1702, 1.0
    %v1704 = vrcp.pop %v1703
    %v1705 = vmul.f32 1.0, %v1704
    %v1706 = vtanh.pop %v1672
    %v1707 = vmul.f32 %v1705, %v1513
    %1709 = vrot.lane.b32.xlu0 %v1706, 64
    %v1710 = vpop.permute.xlu0 %1709
    %v1712 = vmul.f32 %v1705, %v1710
    %1714 = vrot.lane.b32.xlu0 %v1712, 32
    %v1715 = vpop.permute.xlu0 %1714
    %v1717 = vadd.f32 %v1707, %v1715
    %v1718 = vtanh.pop %v1717
    %1720 = vrot.lane.b32.xlu0 %v1718, 64
    %v1721 = vpop.permute.xlu0 %1720
    %v1723 = vmul.f32 %v1705, %v1721
    %1725 = vrot.lane.b32.xlu0 %v1699, 32
    %v1726 = vpop.permute.xlu0 %1725
    %v1727 = vsel %vm191, %v1726, 0
    %1729 = vmatprep.subr.mxu0 %v173
    %1730 = vmatpush1.msra.mxu0 %v172
    %1731 = vmatprep.subr.mxu0 %v175
    %1732 = vmatpush1.msra.mxu0 %v174
    %1733 = vmatprep.subr.mxu0 %v177
    %1734 = vmatpush1.msra.mxu0 %v176
    %1735 = vmatprep.subr.mxu0 %v179
    %1736 = vmatpush1.msra.mxu0 %v178
    %1737 = vmatprep.subr.mxu0 0.0
    %1738 = vmatpush1.msra.mxu0 0.0
    %1739 = vmatprep.subr.mxu0 0.0
    %1740 = vmatpush1.msra.mxu0 0.0
    %1741 = vmatprep.subr.mxu0 0.0
    %1742 = vmatpush1.msra.mxu0 0.0
    %1743 = vmatprep.subr.mxu0 0.0
    %1744 = vmatpush1.msra.mxu0 0.0
    %1745 = vmatprep.subr.mxu0 0.0
    %1746 = vmatpush1.msra.mxu0 0.0
    %1747 = vmatprep.subr.mxu0 0.0
    %1748 = vmatpush1.msra.mxu0 0.0
    %1749 = vmatprep.subr.mxu0 0.0
    %1750 = vmatpush1.msra.mxu0 0.0
    %1751 = vmatprep.subr.mxu0 0.0
    %1752 = vmatpush1.msra.mxu0 0.0
    %1753 = vmatprep.subr.mxu0 0.0
    %1754 = vmatpush1.msra.mxu0 0.0
    %1755 = vmatprep.subr.mxu0 0.0
    %1756 = vmatpush1.msra.mxu0 0.0
    %1757 = vmatprep.subr.mxu0 0.0
    %1758 = vmatpush1.msra.mxu0 0.0
    %1759 = vmatprep.subr.mxu0 0.0
    %1760 = vmatpush1.msra.mxu0 0.0
    %1761 = vmatprep.subr.mxu0 0.0
    %1762 = vmatpush1.msra.mxu0 0.0
    %1763 = vmatprep.subr.mxu0 0.0
    %1764 = vmatpush1.msra.mxu0 0.0
    %1765 = vmatprep.subr.mxu0 0.0
    %1766 = vmatpush1.msra.mxu0 0.0
    %1767 = vmatprep.subr.mxu0 0.0
    %1768 = vmatpush1.msra.mxu0 0.0
    %1769 = vmatprep.subr.mxu0 0.0
    %1770 = vmatpush1.msra.mxu0 0.0
    %1771 = vmatprep.subr.mxu0 0.0
    %1772 = vmatpush1.msra.mxu0 0.0
    %1773 = vmatprep.subr.mxu0 0.0
    %1774 = vmatpush1.msra.mxu0 0.0
    %1775 = vmatprep.subr.mxu0 0.0
    %1776 = vmatpush1.msra.mxu0 0.0
    %1777 = vmatprep.subr.mxu0 0.0
    %1778 = vmatpush1.msra.mxu0 0.0
    %1779 = vmatprep.subr.mxu0 0.0
    %1780 = vmatpush1.msra.mxu0 0.0
    %1781 = vmatprep.subr.mxu0 0.0
    %1782 = vmatpush1.msra.mxu0 0.0
    %1783 = vmatprep.subr.mxu0 0.0
    %1784 = vmatpush1.msra.mxu0 0.0
    %1785 = vmatprep.subr.mxu0 0.0
    %1786 = vmatpush1.msra.mxu0 0.0
    %1787 = vmatprep.subr.mxu0 0.0
    %1788 = vmatpush1.msra.mxu0 0.0
    %1789 = vmatprep.subr.mxu0 0.0
    %1790 = vmatpush1.msra.mxu0 0.0
    %1791 = vmatprep.subr.mxu0 0.0
    %1792 = vmatpush1.msra.mxu0 0.0
    %1793 = vmatprep.mubr.f32.mxu0 0.0
    %1794 = vmatmul.mubr.f32.gmra.mrb[0].mxu0 %v1727
    %v1795 = vpop.f32.mrb[0].mxu0
    %v1796 = vpop.f32.mrb[0].mxu0
    %v1797 = vadd.f32 0.0, %v1796
    %1798 = vdwg.mxu0
    %1800 = vrot.lane.b32.xlu0 %v1723, 32
    %v1801 = vpop.permute.xlu0 %1800
    %v1802 = vsel %vm191, %v1801, 0
    %1804 = vmatprep.subr.mxu0 0.0
    %1805 = vmatpush1.msra.mxu0 %v180
    %1806 = vmatprep.subr.mxu0 0.0
    %1807 = vmatpush1.msra.mxu0 %v181
    %1808 = vmatprep.subr.mxu0 0.0
    %1809 = vmatpush1.msra.mxu0 %v182
    %1810 = vmatprep.subr.mxu0 0.0
    %1811 = vmatpush1.msra.mxu0 %v183
    %1812 = vmatprep.subr.mxu0 0.0
    %1813 = vmatpush1.msra.mxu0 0.0
    %1814 = vmatprep.subr.mxu0 0.0
    %1815 = vmatpush1.msra.mxu0 0.0
    %1816 = vmatprep.subr.mxu0 0.0
    %1817 = vmatpush1.msra.mxu0 0.0
    %1818 = vmatprep.subr.mxu0 0.0
    %1819 = vmatpush1.msra.mxu0 0.0
    %1820 = vmatprep.subr.mxu0 0.0
    %1821 = vmatpush1.msra.mxu0 0.0
    %1822 = vmatprep.subr.mxu0 0.0
    %1823 = vmatpush1.msra.mxu0 0.0
    %1824 = vmatprep.subr.mxu0 0.0
    %1825 = vmatpush1.msra.mxu0 0.0
    %1826 = vmatprep.subr.mxu0 0.0
    %1827 = vmatpush1.msra.mxu0 0.0
    %1828 = vmatprep.subr.mxu0 0.0
    %1829 = vmatpush1.msra.mxu0 0.0
    %1830 = vmatprep.subr.mxu0 0.0
    %1831 = vmatpush1.msra.mxu0 0.0
    %1832 = vmatprep.subr.mxu0 0.0
    %1833 = vmatpush1.msra.mxu0 0.0
    %1834 = vmatprep.subr.mxu0 0.0
    %1835 = vmatpush1.msra.mxu0 0.0
    %1836 = vmatprep.subr.mxu0 0.0
    %1837 = vmatpush1.msra.mxu0 0.0
    %1838 = vmatprep.subr.mxu0 0.0
    %1839 = vmatpush1.msra.mxu0 0.0
    %1840 = vmatprep.subr.mxu0 0.0
    %1841 = vmatpush1.msra.mxu0 0.0
    %1842 = vmatprep.subr.mxu0 0.0
    %1843 = vmatpush1.msra.mxu0 0.0
    %1844 = vmatprep.subr.mxu0 0.0
    %1845 = vmatpush1.msra.mxu0 0.0
    %1846 = vmatprep.subr.mxu0 0.0
    %1847 = vmatpush1.msra.mxu0 0.0
    %1848 = vmatprep.subr.mxu0 0.0
    %1849 = vmatpush1.msra.mxu0 0.0
    %1850 = vmatprep.subr.mxu0 0.0
    %1851 = vmatpush1.msra.mxu0 0.0
    %1852 = vmatprep.subr.mxu0 0.0
    %1853 = vmatpush1.msra.mxu0 0.0
    %1854 = vmatprep.subr.mxu0 0.0
    %1855 = vmatpush1.msra.mxu0 0.0
    %1856 = vmatprep.subr.mxu0 0.0
    %1857 = vmatpush1.msra.mxu0 0.0
    %1858 = vmatprep.subr.mxu0 0.0
    %1859 = vmatpush1.msra.mxu0 0.0
    %1860 = vmatprep.subr.mxu0 0.0
    %1861 = vmatpush1.msra.mxu0 0.0
    %1862 = vmatprep.subr.mxu0 0.0
    %1863 = vmatpush1.msra.mxu0 0.0
    %1864 = vmatprep.subr.mxu0 0.0
    %1865 = vmatpush1.msra.mxu0 0.0
    %1866 = vmatprep.subr.mxu0 0.0
    %1867 = vmatpush1.msra.mxu0 0.0
    %1868 = vmatprep.mubr.f32.mxu0 0.0
    %1869 = vmatmul.mubr.f32.gmra.mrb[0].mxu0 %v1802
    %v1870 = vpop.f32.mrb[0].mxu0
    %v1871 = vadd.f32 0.0, %v1870
    %v1872 = vpop.f32.mrb[0].mxu0
    %1873 = vdwg.mxu0
    %v1874 = vadd.f32 %v1797, %v1871
    %v1875 = vadd.f32 %v1874, %v184
    %v1876 = vxor.u32 %v1875, 2147483648
    %v1877 = vmul.f32 %v1876, 1.442695
    %v1878 = vpow.pop %v1877
    %v1879 = vadd.f32 %v1878, 1.0
    %v1880 = vrcp.pop %v1879
    %v1881 = vmul.f32 1.0, %v1880
    %v1882 = vtanh.pop %v1875
    %v1883 = vmul.f32 %v1881, %v1717
    %1885 = vrot.lane.b32.xlu0 %v1882, 64
    %v1886 = vpop.permute.xlu0 %1885
    %v1888 = vmul.f32 %v1881, %v1886
    %1890 = vrot.lane.b32.xlu0 %v1888, 32
    %v1891 = vpop.permute.xlu0 %1890
    %v1893 = vadd.f32 %v1883, %v1891
    %v1894 = vtanh.pop %v1893
    %1896 = vrot.lane.b32.xlu0 %v1894, 64
    %v1897 = vpop.permute.xlu0 %1896
    %v1899 = vmul.f32 %v1881, %v1897
    %v1900 = vmax.f32 %v1899, 0.0
    %v1901 = vld [vmem:[%s8] sm:$0xff]
    %v1902 = vld [vmem:[%s8 + $0x8] sm:$0xff]
    %v1903 = vld [vmem:[%s8 + $0x10] sm:$0xff]
    %v1904 = vld [vmem:[%s8 + $0x18] sm:$0xff]
    %v1905 = vld [vmem:[%s9] sm:$0x1]
    %v1907 = vlaneseq
    %v1908 = vshrl.u32 %v1907, 7
    %v1909 = vsub.s32 0, %v1908
    %v1910 = vrot.slane %v1905, %v1909
    %1913 = vrot.lane.b32.xlu0 %v1900, 32
    %v1914 = vpop.permute.xlu0 %1913
    %v1915 = vsel %vm191, %v1914, 0
    %1917 = vmatprep.subr.mxu0 0.0
    %1918 = vmatpush1.msra.mxu0 %v1901
    %1919 = vmatprep.subr.mxu0 0.0
    %1920 = vmatpush1.msra.mxu0 %v1902
    %1921 = vmatprep.subr.mxu0 0.0
    %1922 = vmatpush1.msra.mxu0 %v1903
    %1923 = vmatprep.subr.mxu0 0.0
    %1924 = vmatpush1.msra.mxu0 %v1904
    %1925 = vmatprep.subr.mxu0 0.0
    %1926 = vmatpush1.msra.mxu0 0.0
    %1927 = vmatprep.subr.mxu0 0.0
    %1928 = vmatpush1.msra.mxu0 0.0
    %1929 = vmatprep.subr.mxu0 0.0
    %1930 = vmatpush1.msra.mxu0 0.0
    %1931 = vmatprep.subr.mxu0 0.0
    %1932 = vmatpush1.msra.mxu0 0.0
    %1933 = vmatprep.subr.mxu0 0.0
    %1934 = vmatpush1.msra.mxu0 0.0
    %1935 = vmatprep.subr.mxu0 0.0
    %1936 = vmatpush1.msra.mxu0 0.0
    %1937 = vmatprep.subr.mxu0 0.0
    %1938 = vmatpush1.msra.mxu0 0.0
    %1939 = vmatprep.subr.mxu0 0.0
    %1940 = vmatpush1.msra.mxu0 0.0
    %1941 = vmatprep.subr.mxu0 0.0
    %1942 = vmatpush1.msra.mxu0 0.0
    %1943 = vmatprep.subr.mxu0 0.0
    %1944 = vmatpush1.msra.mxu0 0.0
    %1945 = vmatprep.subr.mxu0 0.0
    %1946 = vmatpush1.msra.mxu0 0.0
    %1947 = vmatprep.subr.mxu0 0.0
    %1948 = vmatpush1.msra.mxu0 0.0
    %1949 = vmatprep.subr.mxu0 0.0
    %1950 = vmatpush1.msra.mxu0 0.0
    %1951 = vmatprep.subr.mxu0 0.0
    %1952 = vmatpush1.msra.mxu0 0.0
    %1953 = vmatprep.subr.mxu0 0.0
    %1954 = vmatpush1.msra.mxu0 0.0
    %1955 = vmatprep.subr.mxu0 0.0
    %1956 = vmatpush1.msra.mxu0 0.0
    %1957 = vmatprep.subr.mxu0 0.0
    %1958 = vmatpush1.msra.mxu0 0.0
    %1959 = vmatprep.subr.mxu0 0.0
    %1960 = vmatpush1.msra.mxu0 0.0
    %1961 = vmatprep.subr.mxu0 0.0
    %1962 = vmatpush1.msra.mxu0 0.0
    %1963 = vmatprep.subr.mxu0 0.0
    %1964 = vmatpush1.msra.mxu0 0.0
    %1965 = vmatprep.subr.mxu0 0.0
    %1966 = vmatpush1.msra.mxu0 0.0
    %1967 = vmatprep.subr.mxu0 0.0
    %1968 = vmatpush1.msra.mxu0 0.0
    %1969 = vmatprep.subr.mxu0 0.0
    %1970 = vmatpush1.msra.mxu0 0.0
    %1971 = vmatprep.subr.mxu0 0.0
    %1972 = vmatpush1.msra.mxu0 0.0
    %1973 = vmatprep.subr.mxu0 0.0
    %1974 = vmatpush1.msra.mxu0 0.0
    %1975 = vmatprep.subr.mxu0 0.0
    %1976 = vmatpush1.msra.mxu0 0.0
    %1977 = vmatprep.subr.mxu0 0.0
    %1978 = vmatpush1.msra.mxu0 0.0
    %1979 = vmatprep.subr.mxu0 0.0
    %1980 = vmatpush1.msra.mxu0 0.0
    %1981 = vmatprep.mubr.f32.mxu0 0.0
    %1982 = vmatmul.mubr.f32.gmra.mrb[0].mxu0 %v1915
    %v1983 = vpop.f32.mrb[0].mxu0
    %v1984 = vadd.f32 %v1910, %v1983
    %v1985 = vpop.f32.mrb[0].mxu0
    %1986 = vdwg.mxu0
    %vm1987 = vcmask 25600
    %1988 = vst.msk [vmem:[#allocation8] sm:$0x3] %vm1987, %v1984
    %vm1990 = vcmask 254976
    %1991 = vst.msk [vmem:[#allocation9] sm:$0x3] %vm1990, %v1726
    %1993 = vrot.lane.b32.xlu0 %v1899, 32
    %v1994 = vpop.permute.xlu0 %1993
    %s1996 = scalar_lea.vmem [#allocation9], 2
    %1997 = vst.msk [vmem:[%s1996] sm:$0x3] %vm1990, %v1994
    %1999 = vrot.lane.b32.xlu0 %v1693, 96
    %v2000 = vpop.permute.xlu0 %1999
    %2002 = vst.msk [vmem:[#allocation11] sm:$0x3] %vm1990, %v2000
    %2004 = vrot.lane.b32.xlu0 %v1893, 96
    %v2005 = vpop.permute.xlu0 %2004
    %s2007 = scalar_lea.vmem [#allocation11], 2
    %2008 = vst.msk [vmem:[%s2007] sm:$0x3] %vm1990, %v2005
    // Predicated region
    $region54: #{tpu_custom_call.1} parent=1 // pred_check
      _
    $region55: #{tpu_custom_call.1} parent=1 // pred_check_branch
      %2010 = sbr.rel (0) target = $region57
    $region56: #{tpu_custom_call.1} parent=1 // pred_region
      %s2012 = ssub.s32 32, 32
      %2013 = vsyncadd [#allocation4], %s2012
      %s2015 = sshll.u32 [#allocation8], 4
      %s2016 = int_to_ptr.vmem [resolvable:$true] %s2015
      %2018 = dma.vmem_to_hbm [thread:$0]  %s2016, 32, %s10, [#allocation4]
    $region57: #{tpu_custom_call.1} parent=1 // pred_fallthru
      _
    // Predicated region
    $region58: #{tpu_custom_call.1} parent=1 // pred_check
      _
    $region59: #{tpu_custom_call.1} parent=1 // pred_check_branch
      %2020 = sbr.rel (0) target = $region61
    $region60: #{tpu_custom_call.1} parent=1 // pred_region
      %s2022 = ssub.s32 64, 64
      %2023 = vsyncadd [#allocation10], %s2022
      %s2024 = sshll.u32 [#allocation9], 4
      %s2025 = int_to_ptr.vmem [resolvable:$true] %s2024
      %2030 = dma.vmem_to_hbm [thread:$0]  %s2025, 64, %s11, [#allocation10], 32, 32, 2
    $region61: #{tpu_custom_call.1} parent=1 // pred_fallthru
      _
    // Predicated region
    $region62: #{tpu_custom_call.1} parent=1 // pred_check
      _
    $region63: #{tpu_custom_call.1} parent=1 // pred_check_branch
      %2032 = sbr.rel (0) target = $region65
    $region64: #{tpu_custom_call.1} parent=1 // pred_region
      %s2034 = ssub.s32 64, 64
      %2035 = vsyncadd [#allocation10], %s2034
      %s2036 = sshll.u32 [#allocation11], 4
      %s2037 = int_to_ptr.vmem [resolvable:$true] %s2036
      %2042 = dma.vmem_to_hbm [thread:$0]  %s2037, 64, %s12, [#allocation10], 32, 32, 2
    $region65: #{tpu_custom_call.1} parent=1 // pred_fallthru
      _
    // Predicated region
    $region66: #{tpu_custom_call.1} parent=1 // pred_check
      _
    $region67: #{tpu_custom_call.1} parent=1 // pred_check_branch
      %2044 = sbr.rel (0) target = $region69
    $region68: #{tpu_custom_call.1} parent=1 // pred_region
      %2045 = dma.done [#allocation4], 32
    $region69: #{tpu_custom_call.1} parent=1 // pred_fallthru
      _
    // Predicated region
    $region70: #{tpu_custom_call.1} parent=1 // pred_check
      _
    $region71: #{tpu_custom_call.1} parent=1 // pred_check_branch
      %2047 = sbr.rel (0) target = $region73
    $region72: #{tpu_custom_call.1} parent=1 // pred_region
      %2048 = dma.done [#allocation10], 64
    $region73: #{tpu_custom_call.1} parent=1 // pred_fallthru
      _
    // Predicated region
    $region74: #{tpu_custom_call.1} parent=1 // pred_check
      _
    $region75: #{tpu_custom_call.1} parent=1 // pred_check_branch
      %2050 = sbr.rel (0) target = $region77
    $region76: #{tpu_custom_call.1} parent=1 // pred_region
      %2051 = dma.done [#allocation10], 64
    $region77: #{tpu_custom_call.1} parent=1 // pred_fallthru
      _
    %2052 = vsyncpa [#allocation3], 1
    %2053 = vsyncpa [#allocation6], 1
    %2054 = vsyncpa [#allocation4], 1
    %2055 = vsyncpa [#allocation10], 1

</llo_original>
